<compile_context>
chip_gen: v7x
topology: tpu7x:2x2x1
jax: 0.10.0
libtpu: 0.0.40
codegen_flags: <defaults>
</compile_context>

<pallas_src>
import functools

import jax
import jax.numpy as jnp
from jax.experimental import pallas as pl
from jax.experimental.pallas import tpu as pltpu


def _round_up(x, m):
    return ((x + m - 1) // m) * m


def _choose_cout_tile(cout_pad, cpg):
    """Smallest Cout tile that is a multiple of 128, divides cout_pad, and keeps every
    GroupNorm group inside a single tile (cpg | ct). Falls back to the full cout_pad."""
    t = 128
    while t < cout_pad:
        if cout_pad % t == 0 and t % cpg == 0:
            return t
        t += 128
    return cout_pad


def _vmem_limit_bytes():
    """Physical VMEM minus headroom for Mosaic internal scratch / double buffers."""
    try:
        cap = int(pltpu.get_tpu_info().vmem_capacity_bytes)
    except Exception:
        cap = 64 * 1024 * 1024  # conservative: v7x physical VMEM per TensorCore
    return max(min(cap - 16 * 1024 * 1024, (7 * cap) // 8), 32 * 1024 * 1024)


def block_kernel(x_ref, w_ref, bias_ref, gamma_ref, beta_ref, gproj_ref,
                 scale_ref, shift_ref, o_ref, *,
                 num_taps, tap_row_stride, hw, k_per_tap, ct, inv_n, eps):
    j = pl.program_id(1)
    full_ct = (ct == w_ref.shape[1])          # static
    col0 = pl.multiple_of(j * ct, 128)        # ct is a multiple of 128

    # ---- 3x3 conv on the MXU, f32 accumulation.
    if num_taps == 1:
        # Small-Cin path: one fused dot over the im2col contraction (K = 9*Cin, padded).
        w_blk = w_ref[...] if full_ct else w_ref[:, pl.ds(col0, ct)]
        acc = jnp.dot(x_ref[0], w_blk, preferred_element_type=jnp.float32)
    else:
        # Large-Cin path: one dot per vertical tap (K = 3*Cin, padded). Horizontal taps ride
        # the contraction dim; the vertical shift is a sublane slice of the H-padded slab.
        acc = None
        for t in range(num_taps):
            x_t = x_ref[0, pl.ds(t * tap_row_stride, hw), :]
            if full_ct:
                w_t = w_ref[pl.ds(t * k_per_tap, k_per_tap), :]
            else:
                w_t = w_ref[pl.ds(t * k_per_tap, k_per_tap), pl.ds(col0, ct)]
            d = jnp.dot(x_t, w_t, preferred_element_type=jnp.float32)
            acc = d if acc is None else acc + d
    acc = acc + bias_ref[...]                                      # conv bias (f32)

    # ---- GroupNorm stats: per-channel sums; group reduce+broadcast with ONE block-diagonal
    #      projection matmul (s1, s2 stacked -> a single tiny MXU dot).
    s1 = jnp.sum(acc, axis=0, keepdims=True)                       # (1, ct)
    s2 = jnp.sum(acc * acc, axis=0, keepdims=True)                 # (1, ct)
    stats = jnp.dot(jnp.concatenate([s1, s2], axis=0), gproj_ref[...],
                    preferred_element_type=jnp.float32) * inv_n    # (2, ct)
    mean_c = stats[0:1, :]
    msq_c = stats[1:2, :]
    var_c = jnp.maximum(msq_c - mean_c * mean_c, 0.0)              # clamp: no NaN from cancellation
    inv_std = jax.lax.rsqrt(var_c + eps)

    # ---- fold GroupNorm affine + scale_shift into one FMA: y = acc * A + B
    # scale_ref already holds (scale + 1), precomputed in the wrapper.
    g = gamma_ref[...] * inv_std                                   # (1, ct)
    sp1 = scale_ref[0]
    a_vec = g * sp1
    b_vec = (beta_ref[...] - mean_c * g) * sp1 + shift_ref[0]
    y = acc * a_vec + b_vec

    # ---- SiLU: exp on the EUP + approx reciprocal (no f32 divide)
    y = y * pl.reciprocal(1.0 + jnp.exp(-y), approx=True)

    o_ref[...] = y[None].astype(o_ref.dtype)


def block_forward(x, params, scale_shift=None, *, groups=8, out_dtype=None,
                  channels_last=False, use_tap_path=None):
    """Fused WeightStandardizedConv2d(3x3, pad=1) -> GroupNorm -> scale_shift -> SiLU.

    x: (N, Cin, H, W) float32 (NCHW, like the PyTorch module).
    Returns (N, Cout, H, W), or (N, H, W, Cout) if channels_last=True.
    """
    w, b, gamma, beta = params["w"], params["b"], params["gamma"], params["beta"]
    n, cin, h, wd = x.shape
    cout = w.shape[0]
    hw = h * wd
    assert cout % groups == 0
    cpg = cout // groups
    if out_dtype is None:
        out_dtype = x.dtype

    # ---- Weight standardization (per output channel, eps=1e-5, biased var) in f32
    w_mean = jnp.mean(w, axis=(1, 2, 3), keepdims=True)
    w_var = jnp.var(w, axis=(1, 2, 3), keepdims=True)
    w_std = (w - w_mean) * jax.lax.rsqrt(w_var + 1e-5)
    w_t = jnp.transpose(w_std, (2, 3, 1, 0))              # (dy, dx, Cin, Cout)

    cout_pad = _round_up(cout, 128)
    pad_c = cout_pad - cout

    if use_tap_path is None:
        use_tap_path = (cin >= 128) and (wd % 8 == 0)

    xh = jnp.transpose(x, (0, 2, 3, 1))                   # NHWC
    xp = jnp.pad(xh, ((0, 0), (1, 1), (1, 1), (0, 0)))    # pad H and W by 1

    if use_tap_path:
        # Large-Cin path: H-padded slab with the 3 horizontal taps stacked on the contraction
        # dim (3x activation bytes instead of the 9x im2col slab), bf16.
        k_per_tap = _round_up(3 * cin, 128)
        cols = jnp.concatenate([xp[:, :, dx:dx + wd, :] for dx in range(3)], axis=-1)
        slab = cols.reshape(n, (h + 2) * wd, 3 * cin)
        xt = jnp.pad(slab, ((0, 0), (0, 0), (0, k_per_tap - 3 * cin))).astype(jnp.bfloat16)
        w_rows = w_t.reshape(3, 3 * cin, cout)                              # (dy, dx*Cin, Cout)
        w_rows = jnp.pad(w_rows, ((0, 0), (0, k_per_tap - 3 * cin), (0, pad_c)))
        w_k = w_rows.reshape(3 * k_per_tap, cout_pad).astype(jnp.bfloat16)
        num_taps, tap_row_stride = 3, wd
    else:
        # Small-Cin path: im2col slab, one fused MXU dot with K = 9*Cin (padded), bf16.
        k_per_tap = _round_up(9 * cin, 128)
        taps = [xp[:, dy:dy + h, dx:dx + wd, :].reshape(n, hw, cin)
                for dy in range(3) for dx in range(3)]
        xt = jnp.concatenate(taps, axis=-1)
        xt = jnp.pad(xt, ((0, 0), (0, 0), (0, k_per_tap - 9 * cin))).astype(jnp.bfloat16)
        w_k = w_t.reshape(9 * cin, cout)
        w_k = jnp.pad(w_k, ((0, k_per_tap - 9 * cin), (0, pad_c))).astype(jnp.bfloat16)
        num_taps, tap_row_stride = 1, 0

    # ---- per-channel / per-sample epilogue vectors (f32), lane-padded to cout_pad
    if scale_shift is None:
        scale = jnp.zeros((n, cout), jnp.float32)
        shift = jnp.zeros((n, cout), jnp.float32)
    else:
        scale, shift = scale_shift
    bias_p = jnp.pad(b.astype(jnp.float32), (0, pad_c))[None, :]
    gamma_p = jnp.pad(gamma.astype(jnp.float32), (0, pad_c))[None, :]
    beta_p = jnp.pad(beta.astype(jnp.float32), (0, pad_c))[None, :]
    scale_p1 = jnp.pad(scale.astype(jnp.float32) + 1.0, ((0, 0), (0, pad_c)))[:, None, :]
    shift_p = jnp.pad(shift.astype(jnp.float32), ((0, 0), (0, pad_c)))[:, None, :]

    # Block-diagonal group projection (Cout_pad, Cout_pad): 1 iff same group & real channel.
    ch = jnp.arange(cout_pad)
    same_group = (ch[:, None] // cpg) == (ch[None, :] // cpg)
    real = (ch[:, None] < cout) & (ch[None, :] < cout)
    gproj = (same_group & real).astype(jnp.float32)

    ct = _choose_cout_tile(cout_pad, cpg)   # groups never straddle a tile boundary
    num_ct = cout_pad // ct

    kern = functools.partial(
        block_kernel, num_taps=num_taps, tap_row_stride=tap_row_stride, hw=hw,
        k_per_tap=k_per_tap, ct=ct, inv_n=1.0 / float(hw * cpg), eps=1e-5)

    out = pl.pallas_call(
        kern,
        out_shape=jax.ShapeDtypeStruct((n, hw, cout_pad), out_dtype),
        grid_spec=pltpu.PrefetchScalarGridSpec(
            num_scalar_prefetch=0,
            grid=(n, num_ct),
            in_specs=[
                pl.BlockSpec((1,) + tuple(xt.shape[1:]), lambda i, j: (i, 0, 0)),  # activations
                pl.BlockSpec(tuple(w_k.shape), lambda i, j: (0, 0)),   # weights, resident (no re-DMA)
                pl.BlockSpec((1, ct), lambda i, j: (0, j)),            # conv bias
                pl.BlockSpec((1, ct), lambda i, j: (0, j)),            # gamma
                pl.BlockSpec((1, ct), lambda i, j: (0, j)),            # beta
                pl.BlockSpec((ct, ct), lambda i, j: (j, j)),           # group projection
                pl.BlockSpec((1, 1, ct), lambda i, j: (i, 0, j)),      # scale + 1
                pl.BlockSpec((1, 1, ct), lambda i, j: (i, 0, j)),      # shift
            ],
            out_specs=pl.BlockSpec((1, hw, ct), lambda i, j: (i, 0, j)),
        ),
        compiler_params=pltpu.CompilerParams(
            dimension_semantics=("parallel", "parallel"),
            vmem_limit_bytes=_vmem_limit_bytes(),
        ),
    )(xt, w_k, bias_p, gamma_p, beta_p, gproj, scale_p1, shift_p)

    out = out[:, :, :cout].reshape(n, h, wd, cout)
    if channels_last:
        return out                                  # NHWC, no extra transpose pass
    return jnp.transpose(out, (0, 3, 1, 2))         # NCHW, matches the PyTorch module


def block_reference(x, params, scale_shift=None, *, groups=8):
    """Pure-JAX f32 reference matching the PyTorch forward."""
    w, b, gamma, beta = params["w"], params["b"], params["gamma"], params["beta"]
    w_mean = jnp.mean(w, axis=(1, 2, 3), keepdims=True)
    w_var = jnp.var(w, axis=(1, 2, 3), keepdims=True)
    w_std = (w - w_mean) * jax.lax.rsqrt(w_var + 1e-5)
    y = jax.lax.conv_general_dilated(
        x, w_std, window_strides=(1, 1), padding=((1, 1), (1, 1)),
        dimension_numbers=("NCHW", "OIHW", "NCHW"))
    y = y + b[None, :, None, None]
    n, c, h, wd = y.shape
    yg = y.reshape(n, groups, c // groups, h, wd)
    m = yg.mean(axis=(2, 3, 4), keepdims=True)
    v = yg.var(axis=(2, 3, 4), keepdims=True)
    y = ((yg - m) * jax.lax.rsqrt(v + 1e-5)).reshape(n, c, h, wd)
    y = y * gamma[None, :, None, None] + beta[None, :, None, None]
    if scale_shift is not None:
        scale, shift = scale_shift
        y = y * (scale[:, :, None, None] + 1.0) + shift[:, :, None, None]
    return y * jax.nn.sigmoid(y)


if __name__ == "__main__":
    key = jax.random.PRNGKey(0)

    def make_inputs(k, n, cin, cout, hh, ww):
        kw, kb, kg, kbe, ks, ksh, kx = jax.random.split(k, 7)
        xx = jax.random.normal(kx, (n, cin, hh, ww), jnp.float32)
        pp = dict(
            w=0.1 * jax.random.normal(kw, (cout, cin, 3, 3), jnp.float32),
            b=0.1 * jax.random.normal(kb, (cout,), jnp.float32),
            gamma=1.0 + 0.1 * jax.random.normal(kg, (cout,), jnp.float32),
            beta=0.1 * jax.random.normal(kbe, (cout,), jnp.float32),
        )
        sc = 0.1 * jax.random.normal(ks, (n, cout), jnp.float32)
        sh = 0.1 * jax.random.normal(ksh, (n, cout), jnp.float32)
        return xx, pp, sc, sh

    k1, k2 = jax.random.split(key)

    # ---- 1) small-Cin fused-im2col path (f32, NCHW), with scale_shift
    x, params, scale, shift = make_inputs(k1, 2, 4, 32, 16, 16)
    out = jax.block_until_ready(block_forward(x, params, (scale, shift), groups=8))
    ref = block_reference(x, params, (scale, shift), groups=8)
    assert out.shape == (2, 32, 16, 16)
    err1 = float(jnp.max(jnp.abs(out - ref)))
    assert err1 < 2.5e-2, f"small-Cin path max_err={err1}"

    # ---- 2) large-Cin tap-accumulation path (bf16 output, NHWC), multiple Cout tiles,
    #         no scale_shift
    x2, params2, _, _ = make_inputs(k2, 2, 128, 256, 16, 16)
    out2 = jax.block_until_ready(
        block_forward(x2, params2, None, groups=8,
                      out_dtype=jnp.bfloat16, channels_last=True))
    ref2 = jnp.transpose(block_reference(x2, params2, None, groups=8), (0, 2, 3, 1))
    assert out2.shape == (2, 16, 16, 256)
    err2 = float(jnp.max(jnp.abs(out2.astype(jnp.float32) - ref2)))
    assert err2 < 1e-1, f"large-Cin path max_err={err2}"

    print("KERNEL_OK")
</pallas_src>

<mosaic_0001>
module attributes {stable_mosaic.version = 11 : i64} {
  func.func @block_kernel(%arg0: i32, %arg1: i32, %arg2: memref<1x256x128xbf16, #tpu.memory_space<vmem>>, %arg3: memref<128x128xbf16, #tpu.memory_space<vmem>>, %arg4: memref<1x128xf32, #tpu.memory_space<vmem>>, %arg5: memref<1x128xf32, #tpu.memory_space<vmem>>, %arg6: memref<1x128xf32, #tpu.memory_space<vmem>>, %arg7: memref<128x128xf32, #tpu.memory_space<vmem>>, %arg8: memref<1x1x128xf32, #tpu.memory_space<vmem>>, %arg9: memref<1x1x128xf32, #tpu.memory_space<vmem>>, %arg10: memref<1x256x128xf32, #tpu.memory_space<vmem>>) attributes {dimension_semantics = [#tpu.dimension_semantics<parallel>, #tpu.dimension_semantics<parallel>], iteration_bounds = array<i64: 2, 1>, scalar_prefetch = 0 : i64, scratch_operands = 0 : i64, tpu.core_type = #tpu.core_type<tc>, window_params = [{transform_indices = @transform_0, window_bounds = array<i64: 1, 256, 128>}, {pipeline_mode = #tpu.pipeline_mode<synchronous>, transform_indices = @transform_1, window_bounds = array<i64: 128, 128>}, {transform_indices = @transform_2, window_bounds = array<i64: 1, 128>}, {transform_indices = @transform_3, window_bounds = array<i64: 1, 128>}, {transform_indices = @transform_4, window_bounds = array<i64: 1, 128>}, {transform_indices = @transform_5, window_bounds = array<i64: 128, 128>}, {transform_indices = @transform_6, window_bounds = array<i64: 1, 1, 128>}, {transform_indices = @transform_7, window_bounds = array<i64: 1, 1, 128>}, {transform_indices = @transform_8, window_bounds = array<i64: 1, 256, 128>}]} {
    %c0 = arith.constant 0 : index
    %c0_0 = arith.constant 0 : index
    %0 = vector.load %arg3[%c0, %c0_0] : memref<128x128xbf16, #tpu.memory_space<vmem>>, vector<128x128xbf16>
    %c0_1 = arith.constant 0 : index
    %c0_2 = arith.constant 0 : index
    %c0_3 = arith.constant 0 : index
    %1 = vector.load %arg2[%c0_1, %c0_2, %c0_3] : memref<1x256x128xbf16, #tpu.memory_space<vmem>>, vector<1x256x128xbf16>
    %2 = vector.shape_cast %1 : vector<1x256x128xbf16> to vector<256x128xbf16>
    %cst = arith.constant dense<0.000000e+00> : vector<256x128xf32>
    %3 = tpu.matmul %2, %0, %cst {dimension_numbers = #tpu.dot_dimension_numbers<[1], [0], [0], [1], [0, 0, 1, 1], [], []>} : vector<256x128xbf16>, vector<128x128xbf16>, vector<256x128xf32> -> vector<256x128xf32>
    %c0_4 = arith.constant 0 : index
    %c0_5 = arith.constant 0 : index
    %4 = vector.load %arg4[%c0_4, %c0_5] : memref<1x128xf32, #tpu.memory_space<vmem>>, vector<1x128xf32>
    %5 = vector.broadcast %4 : vector<1x128xf32> to vector<256x128xf32>
    %6 = arith.addf %3, %5 : vector<256x128xf32>
    %cst_6 = arith.constant dense<0.000000e+00> : vector<128xf32>
    %7 = vector.multi_reduction <add>, %6, %cst_6 [0] : vector<256x128xf32> to vector<128xf32>
    %8 = vector.shape_cast %7 : vector<128xf32> to vector<1x128xf32>
    %9 = arith.mulf %6, %6 : vector<256x128xf32>
    %cst_7 = arith.constant dense<0.000000e+00> : vector<128xf32>
    %10 = vector.multi_reduction <add>, %9, %cst_7 [0] : vector<256x128xf32> to vector<128xf32>
    %11 = vector.shape_cast %10 : vector<128xf32> to vector<1x128xf32>
    %12 = tpu.concatenate %8, %11 in 0 : vector<1x128xf32>, vector<1x128xf32> -> vector<2x128xf32>
    %c0_8 = arith.constant 0 : index
    %c0_9 = arith.constant 0 : index
    %13 = vector.load %arg7[%c0_8, %c0_9] : memref<128x128xf32, #tpu.memory_space<vmem>>, vector<128x128xf32>
    %cst_10 = arith.constant dense<0.000000e+00> : vector<2x128xf32>
    %14 = tpu.matmul %12, %13, %cst_10 {dimension_numbers = #tpu.dot_dimension_numbers<[1], [0], [0], [1], [0, 0, 1, 1], [], []>} : vector<2x128xf32>, vector<128x128xf32>, vector<2x128xf32> -> vector<2x128xf32>
    %cst_11 = arith.constant 9.765625E-4 : f32
    %15 = vector.broadcast %cst_11 : f32 to vector<2x128xf32>
    %16 = arith.mulf %14, %15 : vector<2x128xf32>
    %17 = vector.extract_strided_slice %16 {offsets = [0, 0], sizes = [1, 128], strides = [1, 1]} : vector<2x128xf32> to vector<1x128xf32>
    %18 = vector.extract_strided_slice %16 {offsets = [1, 0], sizes = [1, 128], strides = [1, 1]} : vector<2x128xf32> to vector<1x128xf32>
    %19 = arith.mulf %17, %17 : vector<1x128xf32>
    %20 = arith.subf %18, %19 : vector<1x128xf32>
    %cst_12 = arith.constant 0.000000e+00 : f32
    %21 = vector.broadcast %cst_12 : f32 to vector<1x128xf32>
    %22 = arith.maximumf %20, %21 : vector<1x128xf32>
    %cst_13 = arith.constant 9.99999974E-6 : f32
    %23 = vector.broadcast %cst_13 : f32 to vector<1x128xf32>
    %24 = arith.addf %22, %23 : vector<1x128xf32>
    %25 = math.rsqrt %24 : vector<1x128xf32>
    %c0_14 = arith.constant 0 : index
    %c0_15 = arith.constant 0 : index
    %26 = vector.load %arg5[%c0_14, %c0_15] : memref<1x128xf32, #tpu.memory_space<vmem>>, vector<1x128xf32>
    %27 = arith.mulf %26, %25 : vector<1x128xf32>
    %c0_16 = arith.constant 0 : index
    %c0_17 = arith.constant 0 : index
    %c0_18 = arith.constant 0 : index
    %28 = vector.load %arg8[%c0_16, %c0_17, %c0_18] : memref<1x1x128xf32, #tpu.memory_space<vmem>>, vector<1x1x128xf32>
    %29 = vector.shape_cast %28 : vector<1x1x128xf32> to vector<1x128xf32>
    %30 = arith.mulf %27, %29 : vector<1x128xf32>
    %c0_19 = arith.constant 0 : index
    %c0_20 = arith.constant 0 : index
    %31 = vector.load %arg6[%c0_19, %c0_20] : memref<1x128xf32, #tpu.memory_space<vmem>>, vector<1x128xf32>
    %32 = arith.mulf %17, %27 : vector<1x128xf32>
    %33 = arith.subf %31, %32 : vector<1x128xf32>
    %34 = arith.mulf %33, %29 : vector<1x128xf32>
    %c0_21 = arith.constant 0 : index
    %c0_22 = arith.constant 0 : index
    %c0_23 = arith.constant 0 : index
    %35 = vector.load %arg9[%c0_21, %c0_22, %c0_23] : memref<1x1x128xf32, #tpu.memory_space<vmem>>, vector<1x1x128xf32>
    %36 = vector.shape_cast %35 : vector<1x1x128xf32> to vector<1x128xf32>
    %37 = arith.addf %34, %36 : vector<1x128xf32>
    %38 = vector.broadcast %30 : vector<1x128xf32> to vector<256x128xf32>
    %39 = arith.mulf %6, %38 : vector<256x128xf32>
    %40 = vector.broadcast %37 : vector<1x128xf32> to vector<256x128xf32>
    %41 = arith.addf %39, %40 : vector<256x128xf32>
    %cst_24 = arith.constant 0.000000e+00 : f32
    %42 = vector.broadcast %cst_24 : f32 to vector<256x128xf32>
    %43 = arith.subf %42, %41 : vector<256x128xf32>
    %44 = math.exp %43 : vector<256x128xf32>
    %cst_25 = arith.constant 1.000000e+00 : f32
    %45 = vector.broadcast %cst_25 : f32 to vector<256x128xf32>
    %46 = arith.addf %45, %44 : vector<256x128xf32>
    %47 = tpu.reciprocal %46 {approx = true} : vector<256x128xf32> -> vector<256x128xf32>
    %48 = arith.mulf %41, %47 : vector<256x128xf32>
    %49 = vector.shape_cast %48 : vector<256x128xf32> to vector<1x256x128xf32>
    %c0_26 = arith.constant 0 : index
    %c0_27 = arith.constant 0 : index
    %c0_28 = arith.constant 0 : index
    %50 = vector.load %arg10[%c0_26, %c0_27, %c0_28] : memref<1x256x128xf32, #tpu.memory_space<vmem>>, vector<1x256x128xf32>
    tpu.vector_store %arg10[%c0_26, %c0_27, %c0_28], %49 {strides = array<i32>} : memref<1x256x128xf32, #tpu.memory_space<vmem>>, vector<1x256x128xf32>,
    return
  }
  func.func @transform_0(%arg0: i32, %arg1: i32) -> (i32, i32, i32) {
    %c0_i32 = arith.constant 0 : i32
    %c0_i32_0 = arith.constant 0 : i32
    %c0_i32_1 = arith.constant 0 : i32
    return %arg0, %c0_i32, %c0_i32_0 : i32, i32, i32
  }
  func.func @transform_1(%arg0: i32, %arg1: i32) -> (i32, i32) {
    %c0_i32 = arith.constant 0 : i32
    %c0_i32_0 = arith.constant 0 : i32
    %c0_i32_1 = arith.constant 0 : i32
    return %c0_i32, %c0_i32_0 : i32, i32
  }
  func.func @transform_2(%arg0: i32, %arg1: i32) -> (i32, i32) {
    %c0_i32 = arith.constant 0 : i32
    %c0_i32_0 = arith.constant 0 : i32
    return %c0_i32, %arg1 : i32, i32
  }
  func.func @transform_3(%arg0: i32, %arg1: i32) -> (i32, i32) {
    %c0_i32 = arith.constant 0 : i32
    %c0_i32_0 = arith.constant 0 : i32
    return %c0_i32, %arg1 : i32, i32
  }
  func.func @transform_4(%arg0: i32, %arg1: i32) -> (i32, i32) {
    %c0_i32 = arith.constant 0 : i32
    %c0_i32_0 = arith.constant 0 : i32
    return %c0_i32, %arg1 : i32, i32
  }
  func.func @transform_5(%arg0: i32, %arg1: i32) -> (i32, i32) {
    %c0_i32 = arith.constant 0 : i32
    return %arg1, %arg1 : i32, i32
  }
  func.func @transform_6(%arg0: i32, %arg1: i32) -> (i32, i32, i32) {
    %c0_i32 = arith.constant 0 : i32
    %c0_i32_0 = arith.constant 0 : i32
    return %arg0, %c0_i32, %arg1 : i32, i32, i32
  }
  func.func @transform_7(%arg0: i32, %arg1: i32) -> (i32, i32, i32) {
    %c0_i32 = arith.constant 0 : i32
    %c0_i32_0 = arith.constant 0 : i32
    return %arg0, %c0_i32, %arg1 : i32, i32, i32
  }
  func.func @transform_8(%arg0: i32, %arg1: i32) -> (i32, i32, i32) {
    %c0_i32 = arith.constant 0 : i32
    %c0_i32_0 = arith.constant 0 : i32
    return %arg0, %c0_i32, %arg1 : i32, i32, i32
  }
}

</mosaic_0001>

<llo_original>
// kernel: tpu_custom_call.1
$region0: #{tpu_custom_call.1}
  #allocation0 [shape = 'u32[]', space=smem, size = 0x4, offset = 0x4, fixed_abs, tag = 'smem constant byte address 0x4 - core index']
  #allocation1 [shape = 'u32[144,128]{1,0:T(1,128)}', space=vmem, size = 0x12000, scoped, tag = 'internal scratch']
  %s0 = inlined_call_operand.hbm [shape: bf16[2,256,128], index: 0, kind: input, shape index: {}]
  %s1 = inlined_call_operand.hbm [shape: bf16[128,128], index: 1, kind: input, shape index: {}]
  %s2 = inlined_call_operand.vmem [shape: f32[1,128], index: 2, kind: input, shape index: {}]
  %s3 = inlined_call_operand.vmem [shape: f32[1,128], index: 3, kind: input, shape index: {}]
  %s4 = inlined_call_operand.vmem [shape: f32[1,128], index: 4, kind: input, shape index: {}]
  %s5 = inlined_call_operand.hbm [shape: f32[128,128], index: 5, kind: input, shape index: {}]
  %s6 = inlined_call_operand.vmem [shape: f32[2,1,128], index: 6, kind: input, shape index: {}]
  %s7 = inlined_call_operand.vmem [shape: f32[2,1,128], index: 7, kind: input, shape index: {}]
  %s8 = inlined_call_operand.hbm [shape: f32[2,256,128], index: 8, kind: output, shape index: {}]
  %s9 = sld [smem:[#allocation0]]
  $region77: #{tpu_custom_call.1} parent=0
    _
  %s11 = ssub.s32 1, %s9
  %s12 = scalar_select 0, %s11, %s9
  $region1: #{tpu_custom_call.1} parent=0
    #allocation2 [shape = 'u8[131072]{0}', space=vmem, size = 0x20000, scoped, tag = 'input window, operand 0']
    #allocation3 [shape = 's32[2]{0}', space=sflag, size = 0x8, scoped, tag = 'scoped memory for tpu_custom_call.1']
    #allocation4 [shape = 's32[2]{0}', space=sflag, size = 0x8, scoped, tag = 'scoped memory for tpu_custom_call.1']
    #allocation5 [shape = 'u8[32768]{0}', space=vmem, size = 0x8000, scoped, tag = 'input window, operand 1, single buffered']
    #allocation6 [shape = 's32[1]{0}', space=sflag, size = 0x4, scoped, tag = 'scoped memory for tpu_custom_call.1']
    #allocation7 [shape = 'u8[65536]{0}', space=vmem, size = 0x10000, scoped, tag = 'input window, operand 5, single buffered']
    #allocation8 [shape = 'u8[262144]{0}', space=vmem, size = 0x40000, scoped, tag = 'output window, operand 0']
    %13 = vsyncpa [#allocation3], 0
    %s14 = scalar_lea.sflag [#allocation3], 1
    %15 = vsyncpa %s14, 0
    %16 = vsyncpa [#allocation6], 0
    %17 = vsyncpa [#allocation4], 0
    %s18 = scalar_lea.sflag [#allocation4], 1
    %19 = vsyncpa %s18, 0
    loop: start=0, step=1, limit=4
    $region2: #{tpu_custom_call.1} parent=1 // loop_pre_header
      _
    $region3: #{tpu_custom_call.1} parent=1 // loop_header
      %s21 = sphi 0, %s25
      %p22 = scmp.ge.s32.totalorder %s21, 4
      %s28 = sphi 0, %s40
      %s29 = sphi 0, %s36
      %s30 = sphi 0, %s28
      %s31 = sphi 0, %s29
      %s32 = sphi 0, %s30
      %s33 = sphi 0, %s31
      %s43 = sphi 0, %s45
      %s46 = sphi 0, %s43
      %s47 = sphi 0, %s46
      %s63 = sphi 0, %s47
      %s67 = sphi 0, %s67
      %s69 = sphi 0, %s67
      %s70 = sphi 0, %s69
      %s84 = sphi 0, %s70
      %s90 = sphi 0, %s92
      %s93 = sphi 0, %s90
      %s94 = sphi 0, %s93
      %s110 = sphi 0, %s94
      %s116 = sphi 0, %s118
      %s119 = sphi 0, %s116
      %s120 = sphi 0, %s119
      %s136 = sphi 0, %s120
      %s142 = sphi 0, %s144
      %s145 = sphi 0, %s142
      %s146 = sphi 0, %s145
      %s162 = sphi 0, %s146
      %s170 = sphi 0, %s172
      %s173 = sphi 0, %s170
      %s174 = sphi 0, %s173
      %s190 = sphi 0, %s174
      %s198 = sphi 0, %s200
      %s201 = sphi 0, %s198
      %s202 = sphi 0, %s201
      %s218 = sphi 0, %s202
      %s226 = sphi 0, %s228
      %s229 = sphi 0, %s226
      %s230 = sphi 0, %s229
      %s246 = sphi 0, %s230
      %s254 = sphi 0, %s256
      %s257 = sphi 0, %s254
      %s258 = sphi 0, %s257
      %s274 = sphi 0, %s258
    $region4: #{tpu_custom_call.1} parent=1 // loop_header_branch
      %24 = sbr.rel (%p22) target = $region8
    $region5: #{tpu_custom_call.1} parent=1 // loop_body
      %s26 = ssub.s32 %s21, 1
      %s27 = ssub.s32 %s21, 2
      %s34 = sadd.s32 1, %s29
      %p35 = scmp.ge.s32.totalorder %s34, 1
      %s36 = scalar_select %p35, 0, %s34
      %s37 = sadd.s32 1, %s28
      %s38 = scalar_select %p35, %s37, %s28
      %p39 = scmp.ge.s32.totalorder %s38, 2
      %s40 = scalar_select %p39, 0, %s38
      %s41 = ssub.s32 %s28, %s40
      %p42 = scmp.eq.s32.totalorder %s41, 0
      %s44 = sadd.s32 %s43, 1
      %s45 = scalar_select %p42, %s43, %s44
      %p48 = pneg %p42
      %p49 = scmp.eq.s32.totalorder %s21, 1
      %p50 = por %p48, %p49
      %p51 = scmp.ne.s32.totalorder %s43, %s46
      %p52 = scmp.eq.s32.totalorder %s21, 0
      %p53 = por %p51, %p52
      %p54 = scmp.ne.s32.totalorder %s43, %s46
      %p55 = scmp.eq.s32.totalorder %s26, 1
      %p56 = por %p54, %p55
      %p57 = scmp.ne.s32.totalorder %s46, %s47
      %p58 = scmp.eq.s32.totalorder %s26, 0
      %p59 = por %p57, %p58
      %p60 = scmp.ne.s32.totalorder %s46, %s47
      %p61 = scmp.eq.s32.totalorder %s27, 1
      %p62 = por %p60, %p61
      %p64 = scmp.ne.s32.totalorder %s47, %s63
      %p65 = scmp.eq.s32.totalorder %s27, 0
      %p66 = por %p64, %p65
      %s68 = sadd.s32 %s67, 1
      %p71 = scmp.eq.s32.totalorder %s21, 1
      %p72 = scmp.ne.s32.totalorder %s67, %s69
      %p73 = scmp.eq.s32.totalorder %s21, 0
      %p74 = por %p72, %p73
      %p75 = scmp.ne.s32.totalorder %s67, %s69
      %p76 = scmp.eq.s32.totalorder %s26, 1
      %p77 = por %p75, %p76
      %p78 = scmp.ne.s32.totalorder %s69, %s70
      %p79 = scmp.eq.s32.totalorder %s26, 0
      %p80 = por %p78, %p79
      %p81 = scmp.ne.s32.totalorder %s69, %s70
      %p82 = scmp.eq.s32.totalorder %s27, 1
      %p83 = por %p81, %p82
      %p85 = scmp.ne.s32.totalorder %s70, %s84
      %p86 = scmp.eq.s32.totalorder %s27, 0
      %p87 = por %p85, %p86
      %s88 = ssub.s32 %s29, %s36
      %p89 = scmp.eq.s32.totalorder %s88, 0
      %s91 = sadd.s32 %s90, 1
      %s92 = scalar_select %p89, %s90, %s91
      %p95 = pneg %p89
      %p96 = scmp.eq.s32.totalorder %s21, 1
      %p97 = por %p95, %p96
      %p98 = scmp.ne.s32.totalorder %s90, %s93
      %p99 = scmp.eq.s32.totalorder %s21, 0
      %p100 = por %p98, %p99
      %p101 = scmp.ne.s32.totalorder %s90, %s93
      %p102 = scmp.eq.s32.totalorder %s26, 1
      %p103 = por %p101, %p102
      %p104 = scmp.ne.s32.totalorder %s93, %s94
      %p105 = scmp.eq.s32.totalorder %s26, 0
      %p106 = por %p104, %p105
      %p107 = scmp.ne.s32.totalorder %s93, %s94
      %p108 = scmp.eq.s32.totalorder %s27, 1
      %p109 = por %p107, %p108
      %p111 = scmp.ne.s32.totalorder %s94, %s110
      %p112 = scmp.eq.s32.totalorder %s27, 0
      %p113 = por %p111, %p112
      %s114 = ssub.s32 %s29, %s36
      %p115 = scmp.eq.s32.totalorder %s114, 0
      %s117 = sadd.s32 %s116, 1
      %s118 = scalar_select %p115, %s116, %s117
      %p121 = pneg %p115
      %p122 = scmp.eq.s32.totalorder %s21, 1
      %p123 = por %p121, %p122
      %p124 = scmp.ne.s32.totalorder %s116, %s119
      %p125 = scmp.eq.s32.totalorder %s21, 0
      %p126 = por %p124, %p125
      %p127 = scmp.ne.s32.totalorder %s116, %s119
      %p128 = scmp.eq.s32.totalorder %s26, 1
      %p129 = por %p127, %p128
      %p130 = scmp.ne.s32.totalorder %s119, %s120
      %p131 = scmp.eq.s32.totalorder %s26, 0
      %p132 = por %p130, %p131
      %p133 = scmp.ne.s32.totalorder %s119, %s120
      %p134 = scmp.eq.s32.totalorder %s27, 1
      %p135 = por %p133, %p134
      %p137 = scmp.ne.s32.totalorder %s120, %s136
      %p138 = scmp.eq.s32.totalorder %s27, 0
      %p139 = por %p137, %p138
      %s140 = ssub.s32 %s29, %s36
      %p141 = scmp.eq.s32.totalorder %s140, 0
      %s143 = sadd.s32 %s142, 1
      %s144 = scalar_select %p141, %s142, %s143
      %p147 = pneg %p141
      %p148 = scmp.eq.s32.totalorder %s21, 1
      %p149 = por %p147, %p148
      %p150 = scmp.ne.s32.totalorder %s142, %s145
      %p151 = scmp.eq.s32.totalorder %s21, 0
      %p152 = por %p150, %p151
      %p153 = scmp.ne.s32.totalorder %s142, %s145
      %p154 = scmp.eq.s32.totalorder %s26, 1
      %p155 = por %p153, %p154
      %p156 = scmp.ne.s32.totalorder %s145, %s146
      %p157 = scmp.eq.s32.totalorder %s26, 0
      %p158 = por %p156, %p157
      %p159 = scmp.ne.s32.totalorder %s145, %s146
      %p160 = scmp.eq.s32.totalorder %s27, 1
      %p161 = por %p159, %p160
      %p163 = scmp.ne.s32.totalorder %s146, %s162
      %p164 = scmp.eq.s32.totalorder %s27, 0
      %p165 = por %p163, %p164
      %s166 = ssub.s32 %s29, %s36
      %s167 = ssub.s32 %s29, %s36
      %s168 = sor.u32 %s166, %s167
      %p169 = scmp.eq.s32.totalorder %s168, 0
      %s171 = sadd.s32 %s170, 1
      %s172 = scalar_select %p169, %s170, %s171
      %p175 = pneg %p169
      %p176 = scmp.eq.s32.totalorder %s21, 1
      %p177 = por %p175, %p176
      %p178 = scmp.ne.s32.totalorder %s170, %s173
      %p179 = scmp.eq.s32.totalorder %s21, 0
      %p180 = por %p178, %p179
      %p181 = scmp.ne.s32.totalorder %s170, %s173
      %p182 = scmp.eq.s32.totalorder %s26, 1
      %p183 = por %p181, %p182
      %p184 = scmp.ne.s32.totalorder %s173, %s174
      %p185 = scmp.eq.s32.totalorder %s26, 0
      %p186 = por %p184, %p185
      %p187 = scmp.ne.s32.totalorder %s173, %s174
      %p188 = scmp.eq.s32.totalorder %s27, 1
      %p189 = por %p187, %p188
      %p191 = scmp.ne.s32.totalorder %s174, %s190
      %p192 = scmp.eq.s32.totalorder %s27, 0
      %p193 = por %p191, %p192
      %s194 = ssub.s32 %s28, %s40
      %s195 = ssub.s32 %s29, %s36
      %s196 = sor.u32 %s194, %s195
      %p197 = scmp.eq.s32.totalorder %s196, 0
      %s199 = sadd.s32 %s198, 1
      %s200 = scalar_select %p197, %s198, %s199
      %p203 = pneg %p197
      %p204 = scmp.eq.s32.totalorder %s21, 1
      %p205 = por %p203, %p204
      %p206 = scmp.ne.s32.totalorder %s198, %s201
      %p207 = scmp.eq.s32.totalorder %s21, 0
      %p208 = por %p206, %p207
      %p209 = scmp.ne.s32.totalorder %s198, %s201
      %p210 = scmp.eq.s32.totalorder %s26, 1
      %p211 = por %p209, %p210
      %p212 = scmp.ne.s32.totalorder %s201, %s202
      %p213 = scmp.eq.s32.totalorder %s26, 0
      %p214 = por %p212, %p213
      %p215 = scmp.ne.s32.totalorder %s201, %s202
      %p216 = scmp.eq.s32.totalorder %s27, 1
      %p217 = por %p215, %p216
      %p219 = scmp.ne.s32.totalorder %s202, %s218
      %p220 = scmp.eq.s32.totalorder %s27, 0
      %p221 = por %p219, %p220
      %s222 = ssub.s32 %s28, %s40
      %s223 = ssub.s32 %s29, %s36
      %s224 = sor.u32 %s222, %s223
      %p225 = scmp.eq.s32.totalorder %s224, 0
      %s227 = sadd.s32 %s226, 1
      %s228 = scalar_select %p225, %s226, %s227
      %p231 = pneg %p225
      %p232 = scmp.eq.s32.totalorder %s21, 1
      %p233 = por %p231, %p232
      %p234 = scmp.ne.s32.totalorder %s226, %s229
      %p235 = scmp.eq.s32.totalorder %s21, 0
      %p236 = por %p234, %p235
      %p237 = scmp.ne.s32.totalorder %s226, %s229
      %p238 = scmp.eq.s32.totalorder %s26, 1
      %p239 = por %p237, %p238
      %p240 = scmp.ne.s32.totalorder %s229, %s230
      %p241 = scmp.eq.s32.totalorder %s26, 0
      %p242 = por %p240, %p241
      %p243 = scmp.ne.s32.totalorder %s229, %s230
      %p244 = scmp.eq.s32.totalorder %s27, 1
      %p245 = por %p243, %p244
      %p247 = scmp.ne.s32.totalorder %s230, %s246
      %p248 = scmp.eq.s32.totalorder %s27, 0
      %p249 = por %p247, %p248
      %s250 = ssub.s32 %s28, %s40
      %s251 = ssub.s32 %s29, %s36
      %s252 = sor.u32 %s250, %s251
      %p253 = scmp.eq.s32.totalorder %s252, 0
      %s255 = sadd.s32 %s254, 1
      %s256 = scalar_select %p253, %s254, %s255
      %p259 = pneg %p253
      %p260 = scmp.eq.s32.totalorder %s21, 1
      %p261 = por %p259, %p260
      %p262 = scmp.ne.s32.totalorder %s254, %s257
      %p263 = scmp.eq.s32.totalorder %s21, 0
      %p264 = por %p262, %p263
      %p265 = scmp.ne.s32.totalorder %s254, %s257
      %p266 = scmp.eq.s32.totalorder %s26, 1
      %p267 = por %p265, %p266
      %p268 = scmp.ne.s32.totalorder %s257, %s258
      %p269 = scmp.eq.s32.totalorder %s26, 0
      %p270 = por %p268, %p269
      %p271 = scmp.ne.s32.totalorder %s257, %s258
      %p272 = scmp.eq.s32.totalorder %s27, 1
      %p273 = por %p271, %p272
      %p275 = scmp.ne.s32.totalorder %s258, %s274
      %p276 = scmp.eq.s32.totalorder %s27, 0
      %p277 = por %p275, %p276
      %p278 = scmp.le.s32.totalorder 1, %s21
      %p279 = scmp.lt.s32.totalorder %s21, 3
      %p280 = pnand %p278, %p279
      %p281 = pneg %p280
      // Predicated region
      $region9: #{tpu_custom_call.1} parent=5 // pred_check
        _
      $region10: #{tpu_custom_call.1} parent=5 // pred_check_branch
        %283 = sbr.rel (%p280) target = $region12
      $region11: #{tpu_custom_call.1} parent=5 // pred_region
        %s284 = ssub.s32 %s21, 1
        // Predicated region
        $region13: #{tpu_custom_call.1} parent=11 // pred_check
          %p285 = pneg %p80
        $region14: #{tpu_custom_call.1} parent=11 // pred_check_branch
          %287 = sbr.rel (%p285) target = $region16
        $region15: #{tpu_custom_call.1} parent=11 // pred_region
          %s289 = ssub.s32 1024, 1024
          %290 = vsyncadd [#allocation6], %s289
          %s291 = sshll.u32 [#allocation5], 4
          %s292 = int_to_ptr.vmem [resolvable:$true] %s291
          %297 = dma.hbm_to_vmem [thread:$0]  %s1, 1024, %s292, [#allocation6], 64, 64, 4
        $region16: #{tpu_custom_call.1} parent=11 // pred_fallthru
          _
        // Predicated region
        $region17: #{tpu_custom_call.1} parent=11 // pred_check
          %p298 = pneg %p106
        $region18: #{tpu_custom_call.1} parent=11 // pred_check_branch
          %300 = sbr.rel (%p298) target = $region20
        $region19: #{tpu_custom_call.1} parent=11 // pred_region
          %p301 = scmp.lt.s32.totalorder %s31, 0
          %s302 = scalar_select %p301, %s31, 0
          %s303 = scalar_lea.vmem %s2, %s302
        $region20: #{tpu_custom_call.1} parent=11 // pred_fallthru
          _
        // Predicated region
        $region21: #{tpu_custom_call.1} parent=11 // pred_check
          %p304 = pneg %p132
        $region22: #{tpu_custom_call.1} parent=11 // pred_check_branch
          %306 = sbr.rel (%p304) target = $region24
        $region23: #{tpu_custom_call.1} parent=11 // pred_region
          %p307 = scmp.lt.s32.totalorder %s31, 0
          %s308 = scalar_select %p307, %s31, 0
          %s309 = scalar_lea.vmem %s3, %s308
        $region24: #{tpu_custom_call.1} parent=11 // pred_fallthru
          _
        // Predicated region
        $region25: #{tpu_custom_call.1} parent=11 // pred_check
          %p310 = pneg %p158
        $region26: #{tpu_custom_call.1} parent=11 // pred_check_branch
          %312 = sbr.rel (%p310) target = $region28
        $region27: #{tpu_custom_call.1} parent=11 // pred_region
          %p313 = scmp.lt.s32.totalorder %s31, 0
          %s314 = scalar_select %p313, %s31, 0
          %s315 = scalar_lea.vmem %s4, %s314
        $region28: #{tpu_custom_call.1} parent=11 // pred_fallthru
          _
        // Predicated region
        $region29: #{tpu_custom_call.1} parent=11 // pred_check
          %p316 = pneg %p186
        $region30: #{tpu_custom_call.1} parent=11 // pred_check_branch
          %318 = sbr.rel (%p316) target = $region32
        $region31: #{tpu_custom_call.1} parent=11 // pred_region
          %s319 = smul.u32 16, %s31
          %s321 = ssub.s32 2048, 2048
          %322 = vsyncadd [#allocation6], %s321
          %s323 = sadd.s32 %s31, %s319
          %s324 = smul.addr %s323, 128
          %s325 = scalar_lea.hbm %s5, %s324
          %s326 = sshll.u32 [#allocation7], 4
          %s327 = int_to_ptr.vmem [resolvable:$true] %s326
          %332 = dma.hbm_to_vmem [thread:$0]  %s325, 2048, %s327, [#allocation6], 128, 128, 8
        $region32: #{tpu_custom_call.1} parent=11 // pred_fallthru
          _
      $region12: #{tpu_custom_call.1} parent=5 // pred_fallthru
        _
      %p333 = scmp.lt.s32.totalorder %s21, 2
      // Predicated region
      $region33: #{tpu_custom_call.1} parent=5 // pred_check
        %p334 = pneg %p333
      $region34: #{tpu_custom_call.1} parent=5 // pred_check_branch
        %336 = sbr.rel (%p334) target = $region36
      $region35: #{tpu_custom_call.1} parent=5 // pred_region
        // Predicated region
        $region37: #{tpu_custom_call.1} parent=35 // pred_check
          %p337 = pneg %p53
        $region38: #{tpu_custom_call.1} parent=35 // pred_check_branch
          %339 = sbr.rel (%p337) target = $region40
        $region39: #{tpu_custom_call.1} parent=35 // pred_region
          %s340 = sand.u32 %s43, 1
          %s341 = scalar_lea.sflag [#allocation3], %s340
          %s342 = sand.u32 %s43, 1
          %s343 = smul.addr %s342, 128
          %s344 = scalar_lea.vmem [#allocation2], %s343
          %s346 = ssub.s32 2048, 2048
          %347 = vsyncadd %s341, %s346
          %s348 = smul.addr %s28, 32
          %s349 = smul.addr %s348, 64
          %s350 = scalar_lea.hbm %s0, %s349
          %s351 = sshll.u32 %s344, 4
          %s352 = int_to_ptr.vmem [resolvable:$true] %s351
          %357 = dma.hbm_to_vmem [thread:$0]  %s350, 2048, %s352, %s341, 64, 64, 4
        $region40: #{tpu_custom_call.1} parent=35 // pred_fallthru
          _
        // Predicated region
        $region41: #{tpu_custom_call.1} parent=35 // pred_check
          %p358 = pneg %p208
        $region42: #{tpu_custom_call.1} parent=35 // pred_check_branch
          %360 = sbr.rel (%p358) target = $region44
        $region43: #{tpu_custom_call.1} parent=35 // pred_region
          %p361 = scmp.lt.s32.totalorder %s28, 1
          %s362 = scalar_select %p361, %s28, 1
          %p363 = scmp.lt.s32.totalorder %s29, 0
          %s364 = scalar_select %p363, %s29, 0
          %s365 = sadd.s32 %s364, %s362
          %s366 = scalar_lea.vmem %s6, %s365
        $region44: #{tpu_custom_call.1} parent=35 // pred_fallthru
          _
        // Predicated region
        $region45: #{tpu_custom_call.1} parent=35 // pred_check
          %p367 = pneg %p236
        $region46: #{tpu_custom_call.1} parent=35 // pred_check_branch
          %369 = sbr.rel (%p367) target = $region48
        $region47: #{tpu_custom_call.1} parent=35 // pred_region
          %p370 = scmp.lt.s32.totalorder %s28, 1
          %s371 = scalar_select %p370, %s28, 1
          %p372 = scmp.lt.s32.totalorder %s29, 0
          %s373 = scalar_select %p372, %s29, 0
          %s374 = sadd.s32 %s373, %s371
          %s375 = scalar_lea.vmem %s7, %s374
        $region48: #{tpu_custom_call.1} parent=35 // pred_fallthru
          _
      $region36: #{tpu_custom_call.1} parent=5 // pred_fallthru
        _
      %p376 = scmp.le.s32.totalorder 1, %s21
      %p377 = scmp.lt.s32.totalorder %s21, 3
      %p378 = pnand %p376, %p377
      %p379 = pneg %p378
      // Predicated region
      $region49: #{tpu_custom_call.1} parent=5 // pred_check
        _
      $region50: #{tpu_custom_call.1} parent=5 // pred_check_branch
        %381 = sbr.rel (%p378) target = $region52
      $region51: #{tpu_custom_call.1} parent=5 // pred_region
        %s382 = ssub.s32 %s21, 1
        %s383 = sand.u32 %s46, 1
        %s384 = scalar_lea.sflag [#allocation3], %s383
        %s385 = sand.u32 %s46, 1
        %s386 = smul.addr %s385, 128
        %s387 = scalar_lea.vmem [#allocation2], %s386
        // Predicated region
        $region53: #{tpu_custom_call.1} parent=51 // pred_check
          %p388 = pneg %p59
        $region54: #{tpu_custom_call.1} parent=51 // pred_check_branch
          %390 = sbr.rel (%p388) target = $region56
        $region55: #{tpu_custom_call.1} parent=51 // pred_region
          %391 = dma.done %s384, 2048
        $region56: #{tpu_custom_call.1} parent=51 // pred_fallthru
          _
        // Predicated region
        $region57: #{tpu_custom_call.1} parent=51 // pred_check
          %p392 = pneg %p80
        $region58: #{tpu_custom_call.1} parent=51 // pred_check_branch
          %394 = sbr.rel (%p392) target = $region60
        $region59: #{tpu_custom_call.1} parent=51 // pred_region
          %395 = dma.done [#allocation6], 1024
        $region60: #{tpu_custom_call.1} parent=51 // pred_fallthru
          _
        // Predicated region
        $region61: #{tpu_custom_call.1} parent=51 // pred_check
          %p396 = pneg %p186
        $region62: #{tpu_custom_call.1} parent=51 // pred_check_branch
          %398 = sbr.rel (%p396) target = $region64
        $region63: #{tpu_custom_call.1} parent=51 // pred_region
          %399 = dma.done [#allocation6], 2048
        $region64: #{tpu_custom_call.1} parent=51 // pred_fallthru
          _
        %s400 = sand.u32 %s46, 1
        %s401 = scalar_lea.sflag [#allocation3], %s400
        %s402 = sand.u32 %s46, 1
        %s403 = smul.addr %s402, 128
        %s404 = scalar_lea.vmem [#allocation2], %s403
        %p405 = pneg %p59
        %p406 = pneg %p56
        %p407 = pneg %p80
        %p408 = pneg %p77
        %p409 = scmp.lt.s32.totalorder %s31, 0
        %s410 = scalar_select %p409, %s31, 0
        %s411 = scalar_lea.vmem %s2, %s410
        %p412 = pneg %p106
        %p413 = pneg %p103
        %p414 = scmp.lt.s32.totalorder %s31, 0
        %s415 = scalar_select %p414, %s31, 0
        %s416 = scalar_lea.vmem %s3, %s415
        %p417 = pneg %p132
        %p418 = pneg %p129
        %p419 = scmp.lt.s32.totalorder %s31, 0
        %s420 = scalar_select %p419, %s31, 0
        %s421 = scalar_lea.vmem %s4, %s420
        %p422 = pneg %p158
        %p423 = pneg %p155
        %p424 = pneg %p186
        %p425 = pneg %p183
        %p426 = scmp.lt.s32.totalorder %s30, 1
        %s427 = scalar_select %p426, %s30, 1
        %p428 = scmp.lt.s32.totalorder %s31, 0
        %s429 = scalar_select %p428, %s31, 0
        %s430 = sadd.s32 %s429, %s427
        %s431 = scalar_lea.vmem %s6, %s430
        %p432 = pneg %p214
        %p433 = pneg %p211
        %p434 = scmp.lt.s32.totalorder %s30, 1
        %s435 = scalar_select %p434, %s30, 1
        %p436 = scmp.lt.s32.totalorder %s31, 0
        %s437 = scalar_select %p436, %s31, 0
        %s438 = sadd.s32 %s437, %s435
        %s439 = scalar_lea.vmem %s7, %s438
        %p440 = pneg %p242
        %p441 = pneg %p239
        %p442 = pneg %p270
        %p443 = pneg %p267
        %s444 = sand.u32 %s257, 1
        %s445 = scalar_lea.sflag [#allocation4], %s444
        %s446 = sand.u32 %s257, 1
        %s447 = smul.addr %s446, 256
        %s448 = scalar_lea.vmem [#allocation8], %s447
        %p449 = scmp.lt.s32.totalorder %s31, 0
        %s450 = scalar_select %p449, %s31, 0
        %s451 = scalar_lea.vmem %s2, %s450
        %p452 = scmp.lt.s32.totalorder %s31, 0
        %s453 = scalar_select %p452, %s31, 0
        %s454 = scalar_lea.vmem %s3, %s453
        %p455 = scmp.lt.s32.totalorder %s31, 0
        %s456 = scalar_select %p455, %s31, 0
        %s457 = scalar_lea.vmem %s4, %s456
        %s458 = smul.u32 16, %s31
        %p459 = scmp.lt.s32.totalorder %s30, 1
        %s460 = scalar_select %p459, %s30, 1
        %p461 = scmp.lt.s32.totalorder %s31, 0
        %s462 = scalar_select %p461, %s31, 0
        %s463 = sadd.s32 %s462, %s460
        %s464 = scalar_lea.vmem %s6, %s463
        %p465 = scmp.lt.s32.totalorder %s30, 1
        %s466 = scalar_select %p465, %s30, 1
        %p467 = scmp.lt.s32.totalorder %s31, 0
        %s468 = scalar_select %p467, %s31, 0
        %s469 = sadd.s32 %s468, %s466
        %s470 = scalar_lea.vmem %s7, %s469
        %v472 = vld [vmem:[#allocation5] sm:$0xf]
        %v473 = vld [vmem:[#allocation5 + $0x4] sm:$0xf]
        %v474 = vld [vmem:[#allocation5 + $0x8] sm:$0xf]
        %v475 = vld [vmem:[#allocation5 + $0xc] sm:$0xf]
        %v476 = vld [vmem:[#allocation5 + $0x10] sm:$0xf]
        %v477 = vld [vmem:[#allocation5 + $0x14] sm:$0xf]
        %v478 = vld [vmem:[#allocation5 + $0x18] sm:$0xf]
        %v479 = vld [vmem:[#allocation5 + $0x1c] sm:$0xf]
        %v480 = vld [vmem:[#allocation5 + $0x20] sm:$0xf]
        %v481 = vld [vmem:[#allocation5 + $0x24] sm:$0xf]
        %v482 = vld [vmem:[#allocation5 + $0x28] sm:$0xf]
        %v483 = vld [vmem:[#allocation5 + $0x2c] sm:$0xf]
        %v484 = vld [vmem:[#allocation5 + $0x30] sm:$0xf]
        %v485 = vld [vmem:[#allocation5 + $0x34] sm:$0xf]
        %v486 = vld [vmem:[#allocation5 + $0x38] sm:$0xf]
        %v487 = vld [vmem:[#allocation5 + $0x3c] sm:$0xf]
        %v488 = vld [vmem:[%s387] sm:$0xf]
        %v489 = vld [vmem:[%s387 + $0x4] sm:$0xf]
        %v490 = vld [vmem:[%s387 + $0x8] sm:$0xf]
        %v491 = vld [vmem:[%s387 + $0xc] sm:$0xf]
        %v492 = vld [vmem:[%s387 + $0x10] sm:$0xf]
        %v493 = vld [vmem:[%s387 + $0x14] sm:$0xf]
        %v494 = vld [vmem:[%s387 + $0x18] sm:$0xf]
        %v495 = vld [vmem:[%s387 + $0x1c] sm:$0xf]
        %v496 = vld [vmem:[%s387 + $0x20] sm:$0xf]
        %v497 = vld [vmem:[%s387 + $0x24] sm:$0xf]
        %v498 = vld [vmem:[%s387 + $0x28] sm:$0xf]
        %v499 = vld [vmem:[%s387 + $0x2c] sm:$0xf]
        %v500 = vld [vmem:[%s387 + $0x30] sm:$0xf]
        %v501 = vld [vmem:[%s387 + $0x34] sm:$0xf]
        %v502 = vld [vmem:[%s387 + $0x38] sm:$0xf]
        %v503 = vld [vmem:[%s387 + $0x3c] sm:$0xf]
        %v504 = vld [vmem:[%s387 + $0x40] sm:$0xf]
        %v505 = vld [vmem:[%s387 + $0x44] sm:$0xf]
        %v506 = vld [vmem:[%s387 + $0x48] sm:$0xf]
        %v507 = vld [vmem:[%s387 + $0x4c] sm:$0xf]
        %v508 = vld [vmem:[%s387 + $0x50] sm:$0xf]
        %v509 = vld [vmem:[%s387 + $0x54] sm:$0xf]
        %v510 = vld [vmem:[%s387 + $0x58] sm:$0xf]
        %v511 = vld [vmem:[%s387 + $0x5c] sm:$0xf]
        %v512 = vld [vmem:[%s387 + $0x60] sm:$0xf]
        %v513 = vld [vmem:[%s387 + $0x64] sm:$0xf]
        %v514 = vld [vmem:[%s387 + $0x68] sm:$0xf]
        %v515 = vld [vmem:[%s387 + $0x6c] sm:$0xf]
        %v516 = vld [vmem:[%s387 + $0x70] sm:$0xf]
        %v517 = vld [vmem:[%s387 + $0x74] sm:$0xf]
        %v518 = vld [vmem:[%s387 + $0x78] sm:$0xf]
        %v519 = vld [vmem:[%s387 + $0x7c] sm:$0xf]
        %v520 = vld [vmem:[%s451] sm:$0x1]
        %v522 = vlaneseq
        %v523 = vshrl.u32 %v522, 7
        %v524 = vsub.s32 0, %v523
        %v525 = vrot.slane %v520, %v524
        %v559 = vunpack.c.l.b16 %v488
        %v560 = vunpack.c.l.b16 %v489
        %v561 = vunpack.c.l.b16 %v490
        %v562 = vunpack.c.l.b16 %v491
        %v563 = vunpack.c.l.b16 %v492
        %v564 = vunpack.c.l.b16 %v493
        %v565 = vunpack.c.l.b16 %v494
        %v566 = vunpack.c.l.b16 %v495
        %v567 = vunpack.c.l.b16 %v496
        %v568 = vunpack.c.l.b16 %v497
        %v569 = vunpack.c.l.b16 %v498
        %v570 = vunpack.c.l.b16 %v499
        %v571 = vunpack.c.l.b16 %v500
        %v572 = vunpack.c.l.b16 %v501
        %v573 = vunpack.c.l.b16 %v502
        %v574 = vunpack.c.l.b16 %v503
        %v575 = vunpack.c.l.b16 %v504
        %v576 = vunpack.c.l.b16 %v505
        %v577 = vunpack.c.l.b16 %v506
        %v578 = vunpack.c.l.b16 %v507
        %v579 = vunpack.c.l.b16 %v508
        %v580 = vunpack.c.l.b16 %v509
        %v581 = vunpack.c.l.b16 %v510
        %v582 = vunpack.c.l.b16 %v511
        %v583 = vunpack.c.l.b16 %v512
        %v584 = vunpack.c.l.b16 %v513
        %v585 = vunpack.c.l.b16 %v514
        %v586 = vunpack.c.l.b16 %v515
        %v587 = vunpack.c.l.b16 %v516
        %v588 = vunpack.c.l.b16 %v517
        %v589 = vunpack.c.l.b16 %v518
        %v590 = vunpack.c.l.b16 %v519
        %v591 = vpack.c.b16 %v560, %v559
        %v592 = vpack.c.b16 %v562, %v561
        %v593 = vpack.c.b16 %v564, %v563
        %v594 = vpack.c.b16 %v566, %v565
        %v595 = vpack.c.b16 %v568, %v567
        %v596 = vpack.c.b16 %v570, %v569
        %v597 = vpack.c.b16 %v572, %v571
        %v598 = vpack.c.b16 %v574, %v573
        %v599 = vpack.c.b16 %v576, %v575
        %v600 = vpack.c.b16 %v578, %v577
        %v601 = vpack.c.b16 %v580, %v579
        %v602 = vpack.c.b16 %v582, %v581
        %v603 = vpack.c.b16 %v584, %v583
        %v604 = vpack.c.b16 %v586, %v585
        %v605 = vpack.c.b16 %v588, %v587
        %v606 = vpack.c.b16 %v590, %v589
        %v639 = vunpack.c.l.b16 %v472
        %v640 = vunpack.c.l.b16 %v473
        %v641 = vunpack.c.l.b16 %v474
        %v642 = vunpack.c.l.b16 %v475
        %v643 = vunpack.c.l.b16 %v476
        %v644 = vunpack.c.l.b16 %v477
        %v645 = vunpack.c.l.b16 %v478
        %v646 = vunpack.c.l.b16 %v479
        %v647 = vunpack.c.l.b16 %v480
        %v648 = vunpack.c.l.b16 %v481
        %v649 = vunpack.c.l.b16 %v482
        %v650 = vunpack.c.l.b16 %v483
        %v651 = vunpack.c.l.b16 %v484
        %v652 = vunpack.c.l.b16 %v485
        %v653 = vunpack.c.l.b16 %v486
        %v654 = vunpack.c.l.b16 %v487
        %v655 = vpack.c.b16 %v640, %v639
        %v656 = vpack.c.b16 %v642, %v641
        %v657 = vpack.c.b16 %v644, %v643
        %v658 = vpack.c.b16 %v646, %v645
        %v659 = vpack.c.b16 %v648, %v647
        %v660 = vpack.c.b16 %v650, %v649
        %v661 = vpack.c.b16 %v652, %v651
        %v662 = vpack.c.b16 %v654, %v653
        %671 = vmatprep.subr.bf16.mxu0 0
        %672 = vmatpush1.bf16.msra.mxu0 %v655
        %673 = vmatprep.subr.bf16.mxu0 0
        %674 = vmatpush1.bf16.msra.mxu0 %v656
        %675 = vmatprep.subr.bf16.mxu0 0
        %676 = vmatpush1.bf16.msra.mxu0 %v657
        %677 = vmatprep.subr.bf16.mxu0 0
        %678 = vmatpush1.bf16.msra.mxu0 %v658
        %679 = vmatprep.subr.bf16.mxu0 0
        %680 = vmatpush1.bf16.msra.mxu0 %v659
        %681 = vmatprep.subr.bf16.mxu0 0
        %682 = vmatpush1.bf16.msra.mxu0 %v660
        %683 = vmatprep.subr.bf16.mxu0 0
        %684 = vmatpush1.bf16.msra.mxu0 %v661
        %685 = vmatprep.subr.bf16.mxu0 0
        %686 = vmatpush1.bf16.msra.mxu0 %v662
        %687 = vmatprep.subr.bf16.mxu0 0
        %688 = vmatpush1.bf16.msra.mxu0 0
        %689 = vmatprep.subr.bf16.mxu0 0
        %690 = vmatpush1.bf16.msra.mxu0 0
        %691 = vmatprep.subr.bf16.mxu0 0
        %692 = vmatpush1.bf16.msra.mxu0 0
        %693 = vmatprep.subr.bf16.mxu0 0
        %694 = vmatpush1.bf16.msra.mxu0 0
        %695 = vmatprep.subr.bf16.mxu0 0
        %696 = vmatpush1.bf16.msra.mxu0 0
        %697 = vmatprep.subr.bf16.mxu0 0
        %698 = vmatpush1.bf16.msra.mxu0 0
        %699 = vmatprep.subr.bf16.mxu0 0
        %700 = vmatpush1.bf16.msra.mxu0 0
        %701 = vmatprep.subr.bf16.mxu0 0
        %702 = vmatpush1.bf16.msra.mxu0 0
        %703 = vmatprep.mubr.bf16.mxu0 0
        %704 = vmatmul.mubr.bf16.gmra.mrb[0].mxu0 %v591
        %v705 = vpop.f32.mrb[0].mxu0
        %v706 = vadd.f32 %v525, %v705
        %v707 = vpop.f32.mrb[0].mxu0
        %v708 = vpop.f32.mrb[0].mxu0
        %v709 = vadd.f32 %v525, %v708
        %v710 = vpop.f32.mrb[0].mxu0
        %711 = vmatprep.mubr.bf16.mxu0 0
        %712 = vmatmul.mubr.bf16.gmra.mrb[0].mxu0 %v592
        %v713 = vpop.f32.mrb[0].mxu0
        %v714 = vadd.f32 %v525, %v713
        %v715 = vpop.f32.mrb[0].mxu0
        %v716 = vpop.f32.mrb[0].mxu0
        %v717 = vadd.f32 %v525, %v716
        %v718 = vpop.f32.mrb[0].mxu0
        %719 = vmatprep.mubr.bf16.mxu0 0
        %720 = vmatmul.mubr.bf16.gmra.mrb[0].mxu0 %v593
        %v721 = vpop.f32.mrb[0].mxu0
        %v722 = vadd.f32 %v525, %v721
        %v723 = vpop.f32.mrb[0].mxu0
        %v724 = vpop.f32.mrb[0].mxu0
        %v725 = vadd.f32 %v525, %v724
        %v726 = vpop.f32.mrb[0].mxu0
        %727 = vmatprep.mubr.bf16.mxu0 0
        %728 = vmatmul.mubr.bf16.gmra.mrb[0].mxu0 %v594
        %v729 = vpop.f32.mrb[0].mxu0
        %v730 = vadd.f32 %v525, %v729
        %v731 = vpop.f32.mrb[0].mxu0
        %v732 = vpop.f32.mrb[0].mxu0
        %v733 = vadd.f32 %v525, %v732
        %v734 = vpop.f32.mrb[0].mxu0
        %735 = vmatprep.mubr.bf16.mxu0 0
        %736 = vmatmul.mubr.bf16.gmra.mrb[0].mxu0 %v595
        %v737 = vpop.f32.mrb[0].mxu0
        %v738 = vadd.f32 %v525, %v737
        %v739 = vpop.f32.mrb[0].mxu0
        %v740 = vpop.f32.mrb[0].mxu0
        %v741 = vadd.f32 %v525, %v740
        %v742 = vpop.f32.mrb[0].mxu0
        %743 = vmatprep.mubr.bf16.mxu0 0
        %744 = vmatmul.mubr.bf16.gmra.mrb[0].mxu0 %v596
        %v745 = vpop.f32.mrb[0].mxu0
        %v746 = vadd.f32 %v525, %v745
        %v747 = vpop.f32.mrb[0].mxu0
        %v748 = vpop.f32.mrb[0].mxu0
        %v749 = vadd.f32 %v525, %v748
        %v750 = vpop.f32.mrb[0].mxu0
        %751 = vmatprep.mubr.bf16.mxu0 0
        %752 = vmatmul.mubr.bf16.gmra.mrb[0].mxu0 %v597
        %v753 = vpop.f32.mrb[0].mxu0
        %v754 = vadd.f32 %v525, %v753
        %v755 = vpop.f32.mrb[0].mxu0
        %v756 = vpop.f32.mrb[0].mxu0
        %v757 = vadd.f32 %v525, %v756
        %v758 = vpop.f32.mrb[0].mxu0
        %759 = vmatprep.mubr.bf16.mxu0 0
        %760 = vmatmul.mubr.bf16.gmra.mrb[0].mxu0 %v598
        %v761 = vpop.f32.mrb[0].mxu0
        %v762 = vadd.f32 %v525, %v761
        %v763 = vpop.f32.mrb[0].mxu0
        %v764 = vpop.f32.mrb[0].mxu0
        %v765 = vadd.f32 %v525, %v764
        %v766 = vpop.f32.mrb[0].mxu0
        %767 = vmatprep.mubr.bf16.mxu0 0
        %768 = vmatmul.mubr.bf16.gmra.mrb[0].mxu0 %v599
        %v769 = vpop.f32.mrb[0].mxu0
        %v770 = vadd.f32 %v525, %v769
        %v771 = vpop.f32.mrb[0].mxu0
        %v772 = vpop.f32.mrb[0].mxu0
        %v773 = vadd.f32 %v525, %v772
        %v774 = vpop.f32.mrb[0].mxu0
        %775 = vmatprep.mubr.bf16.mxu0 0
        %776 = vmatmul.mubr.bf16.gmra.mrb[0].mxu0 %v600
        %v777 = vpop.f32.mrb[0].mxu0
        %v778 = vadd.f32 %v525, %v777
        %v779 = vpop.f32.mrb[0].mxu0
        %v780 = vpop.f32.mrb[0].mxu0
        %v781 = vadd.f32 %v525, %v780
        %v782 = vpop.f32.mrb[0].mxu0
        %783 = vmatprep.mubr.bf16.mxu0 0
        %784 = vmatmul.mubr.bf16.gmra.mrb[0].mxu0 %v601
        %v785 = vpop.f32.mrb[0].mxu0
        %v786 = vadd.f32 %v525, %v785
        %v787 = vpop.f32.mrb[0].mxu0
        %v788 = vpop.f32.mrb[0].mxu0
        %v789 = vadd.f32 %v525, %v788
        %v790 = vpop.f32.mrb[0].mxu0
        %791 = vmatprep.mubr.bf16.mxu0 0
        %792 = vmatmul.mubr.bf16.gmra.mrb[0].mxu0 %v602
        %v793 = vpop.f32.mrb[0].mxu0
        %v794 = vadd.f32 %v525, %v793
        %v795 = vpop.f32.mrb[0].mxu0
        %v796 = vpop.f32.mrb[0].mxu0
        %v797 = vadd.f32 %v525, %v796
        %v798 = vpop.f32.mrb[0].mxu0
        %799 = vmatprep.mubr.bf16.mxu0 0
        %800 = vmatmul.mubr.bf16.gmra.mrb[0].mxu0 %v603
        %v801 = vpop.f32.mrb[0].mxu0
        %v802 = vadd.f32 %v525, %v801
        %v803 = vpop.f32.mrb[0].mxu0
        %v804 = vpop.f32.mrb[0].mxu0
        %v805 = vadd.f32 %v525, %v804
        %v806 = vpop.f32.mrb[0].mxu0
        %807 = vmatprep.mubr.bf16.mxu0 0
        %808 = vmatmul.mubr.bf16.gmra.mrb[0].mxu0 %v604
        %v809 = vpop.f32.mrb[0].mxu0
        %v810 = vadd.f32 %v525, %v809
        %v811 = vpop.f32.mrb[0].mxu0
        %v812 = vpop.f32.mrb[0].mxu0
        %v813 = vadd.f32 %v525, %v812
        %v814 = vpop.f32.mrb[0].mxu0
        %815 = vmatprep.mubr.bf16.mxu0 0
        %816 = vmatmul.mubr.bf16.gmra.mrb[0].mxu0 %v605
        %v817 = vpop.f32.mrb[0].mxu0
        %v818 = vadd.f32 %v525, %v817
        %v819 = vpop.f32.mrb[0].mxu0
        %v820 = vpop.f32.mrb[0].mxu0
        %v821 = vadd.f32 %v525, %v820
        %v822 = vpop.f32.mrb[0].mxu0
        %823 = vmatprep.mubr.bf16.mxu0 0
        %824 = vmatmul.mubr.bf16.gmra.mrb[0].mxu0 %v606
        %v825 = vpop.f32.mrb[0].mxu0
        %v826 = vadd.f32 %v525, %v825
        %v827 = vpop.f32.mrb[0].mxu0
        %v828 = vpop.f32.mrb[0].mxu0
        %v829 = vadd.f32 %v525, %v828
        %v830 = vpop.f32.mrb[0].mxu0
        %831 = vdwg.mxu0
        %v832 = vadd.f32 %v706, %v709
        %v833 = vadd.f32 %v832, %v714
        %v834 = vadd.f32 %v833, %v717
        %v835 = vadd.f32 %v834, %v722
        %v836 = vadd.f32 %v835, %v725
        %v837 = vadd.f32 %v836, %v730
        %v838 = vadd.f32 %v837, %v733
        %v839 = vadd.f32 %v838, %v738
        %v840 = vadd.f32 %v839, %v741
        %v841 = vadd.f32 %v840, %v746
        %v842 = vadd.f32 %v841, %v749
        %v843 = vadd.f32 %v842, %v754
        %v844 = vadd.f32 %v843, %v757
        %v845 = vadd.f32 %v844, %v762
        %v846 = vadd.f32 %v845, %v765
        %v847 = vadd.f32 %v846, %v770
        %v848 = vadd.f32 %v847, %v773
        %v849 = vadd.f32 %v848, %v778
        %v850 = vadd.f32 %v849, %v781
        %v851 = vadd.f32 %v850, %v786
        %v852 = vadd.f32 %v851, %v789
        %v853 = vadd.f32 %v852, %v794
        %v854 = vadd.f32 %v853, %v797
        %v855 = vadd.f32 %v854, %v802
        %v856 = vadd.f32 %v855, %v805
        %v857 = vadd.f32 %v856, %v810
        %v858 = vadd.f32 %v857, %v813
        %v859 = vadd.f32 %v858, %v818
        %v860 = vadd.f32 %v859, %v821
        %v861 = vadd.f32 %v860, %v826
        %v862 = vadd.f32 %v861, %v829
        %v863 = vrot.slane %v862, 4
        %v864 = vadd.f32 %v862, %v863
        %v865 = vrot.slane %v864, 2
        %v866 = vadd.f32 %v864, %v865
        %v867 = vrot.slane %v866, 1
        %v868 = vadd.f32 %v866, %v867
        %v869 = vmul.f32 %v706, %v706
        %v870 = vmul.f32 %v709, %v709
        %v871 = vmul.f32 %v714, %v714
        %v872 = vmul.f32 %v717, %v717
        %v873 = vmul.f32 %v722, %v722
        %v874 = vmul.f32 %v725, %v725
        %v875 = vmul.f32 %v730, %v730
        %v876 = vmul.f32 %v733, %v733
        %v877 = vmul.f32 %v738, %v738
        %v878 = vmul.f32 %v741, %v741
        %v879 = vmul.f32 %v746, %v746
        %v880 = vmul.f32 %v749, %v749
        %v881 = vmul.f32 %v754, %v754
        %v882 = vmul.f32 %v757, %v757
        %v883 = vmul.f32 %v762, %v762
        %v884 = vmul.f32 %v765, %v765
        %v885 = vmul.f32 %v770, %v770
        %v886 = vmul.f32 %v773, %v773
        %v887 = vmul.f32 %v778, %v778
        %v888 = vmul.f32 %v781, %v781
        %v889 = vmul.f32 %v786, %v786
        %v890 = vmul.f32 %v789, %v789
        %v891 = vmul.f32 %v794, %v794
        %v892 = vmul.f32 %v797, %v797
        %v893 = vmul.f32 %v802, %v802
        %v894 = vmul.f32 %v805, %v805
        %v895 = vmul.f32 %v810, %v810
        %v896 = vmul.f32 %v813, %v813
        %v897 = vmul.f32 %v818, %v818
        %v898 = vmul.f32 %v821, %v821
        %v899 = vmul.f32 %v826, %v826
        %v900 = vmul.f32 %v829, %v829
        %v901 = vadd.f32 %v869, %v870
        %v902 = vadd.f32 %v901, %v871
        %v903 = vadd.f32 %v902, %v872
        %v904 = vadd.f32 %v903, %v873
        %v905 = vadd.f32 %v904, %v874
        %v906 = vadd.f32 %v905, %v875
        %v907 = vadd.f32 %v906, %v876
        %v908 = vadd.f32 %v907, %v877
        %v909 = vadd.f32 %v908, %v878
        %v910 = vadd.f32 %v909, %v879
        %v911 = vadd.f32 %v910, %v880
        %v912 = vadd.f32 %v911, %v881
        %v913 = vadd.f32 %v912, %v882
        %v914 = vadd.f32 %v913, %v883
        %v915 = vadd.f32 %v914, %v884
        %v916 = vadd.f32 %v915, %v885
        %v917 = vadd.f32 %v916, %v886
        %v918 = vadd.f32 %v917, %v887
        %v919 = vadd.f32 %v918, %v888
        %v920 = vadd.f32 %v919, %v889
        %v921 = vadd.f32 %v920, %v890
        %v922 = vadd.f32 %v921, %v891
        %v923 = vadd.f32 %v922, %v892
        %v924 = vadd.f32 %v923, %v893
        %v925 = vadd.f32 %v924, %v894
        %v926 = vadd.f32 %v925, %v895
        %v927 = vadd.f32 %v926, %v896
        %v928 = vadd.f32 %v927, %v897
        %v929 = vadd.f32 %v928, %v898
        %v930 = vadd.f32 %v929, %v899
        %v931 = vadd.f32 %v930, %v900
        %v932 = vrot.slane %v931, 4
        %v933 = vadd.f32 %v931, %v932
        %v934 = vrot.slane %v933, 2
        %v935 = vadd.f32 %v933, %v934
        %v936 = vrot.slane %v935, 1
        %v937 = vadd.f32 %v935, %v936
        %vm938 = vcmask 1040384
        %v939 = vsel %vm938, %v868, %v937
        %v940 = vld [vmem:[#allocation7] sm:$0xff]
        %v941 = vld [vmem:[#allocation7 + $0x8] sm:$0xff]
        %v942 = vld [vmem:[#allocation7 + $0x10] sm:$0xff]
        %v943 = vld [vmem:[#allocation7 + $0x18] sm:$0xff]
        %v944 = vld [vmem:[#allocation7 + $0x20] sm:$0xff]
        %v945 = vld [vmem:[#allocation7 + $0x28] sm:$0xff]
        %v946 = vld [vmem:[#allocation7 + $0x30] sm:$0xff]
        %v947 = vld [vmem:[#allocation7 + $0x38] sm:$0xff]
        %v948 = vld [vmem:[#allocation7 + $0x40] sm:$0xff]
        %v949 = vld [vmem:[#allocation7 + $0x48] sm:$0xff]
        %v950 = vld [vmem:[#allocation7 + $0x50] sm:$0xff]
        %v951 = vld [vmem:[#allocation7 + $0x58] sm:$0xff]
        %v952 = vld [vmem:[#allocation7 + $0x60] sm:$0xff]
        %v953 = vld [vmem:[#allocation7 + $0x68] sm:$0xff]
        %v954 = vld [vmem:[#allocation7 + $0x70] sm:$0xff]
        %v955 = vld [vmem:[#allocation7 + $0x78] sm:$0xff]
        %956 = vmatprep.subr.mxu0 0.0
        %957 = vmatpush1.msra.mxu0 %v940
        %958 = vmatprep.subr.mxu0 0.0
        %959 = vmatpush1.msra.mxu0 %v941
        %960 = vmatprep.subr.mxu0 0.0
        %961 = vmatpush1.msra.mxu0 %v942
        %962 = vmatprep.subr.mxu0 0.0
        %963 = vmatpush1.msra.mxu0 %v943
        %964 = vmatprep.subr.mxu0 0.0
        %965 = vmatpush1.msra.mxu0 %v944
        %966 = vmatprep.subr.mxu0 0.0
        %967 = vmatpush1.msra.mxu0 %v945
        %968 = vmatprep.subr.mxu0 0.0
        %969 = vmatpush1.msra.mxu0 %v946
        %970 = vmatprep.subr.mxu0 0.0
        %971 = vmatpush1.msra.mxu0 %v947
        %972 = vmatprep.subr.mxu0 0.0
        %973 = vmatpush1.msra.mxu0 %v948
        %974 = vmatprep.subr.mxu0 0.0
        %975 = vmatpush1.msra.mxu0 %v949
        %976 = vmatprep.subr.mxu0 0.0
        %977 = vmatpush1.msra.mxu0 %v950
        %978 = vmatprep.subr.mxu0 0.0
        %979 = vmatpush1.msra.mxu0 %v951
        %980 = vmatprep.subr.mxu0 0.0
        %981 = vmatpush1.msra.mxu0 %v952
        %982 = vmatprep.subr.mxu0 0.0
        %983 = vmatpush1.msra.mxu0 %v953
        %984 = vmatprep.subr.mxu0 0.0
        %985 = vmatpush1.msra.mxu0 %v954
        %986 = vmatprep.subr.mxu0 0.0
        %987 = vmatpush1.msra.mxu0 %v955
        %988 = vmatprep.subr.mxu0 0.0
        %989 = vmatpush1.msra.mxu0 0.0
        %990 = vmatprep.subr.mxu0 0.0
        %991 = vmatpush1.msra.mxu0 0.0
        %992 = vmatprep.subr.mxu0 0.0
        %993 = vmatpush1.msra.mxu0 0.0
        %994 = vmatprep.subr.mxu0 0.0
        %995 = vmatpush1.msra.mxu0 0.0
        %996 = vmatprep.subr.mxu0 0.0
        %997 = vmatpush1.msra.mxu0 0.0
        %998 = vmatprep.subr.mxu0 0.0
        %999 = vmatpush1.msra.mxu0 0.0
        %1000 = vmatprep.subr.mxu0 0.0
        %1001 = vmatpush1.msra.mxu0 0.0
        %1002 = vmatprep.subr.mxu0 0.0
        %1003 = vmatpush1.msra.mxu0 0.0
        %1004 = vmatprep.subr.mxu0 0.0
        %1005 = vmatpush1.msra.mxu0 0.0
        %1006 = vmatprep.subr.mxu0 0.0
        %1007 = vmatpush1.msra.mxu0 0.0
        %1008 = vmatprep.subr.mxu0 0.0
        %1009 = vmatpush1.msra.mxu0 0.0
        %1010 = vmatprep.subr.mxu0 0.0
        %1011 = vmatpush1.msra.mxu0 0.0
        %1012 = vmatprep.subr.mxu0 0.0
        %1013 = vmatpush1.msra.mxu0 0.0
        %1014 = vmatprep.subr.mxu0 0.0
        %1015 = vmatpush1.msra.mxu0 0.0
        %1016 = vmatprep.subr.mxu0 0.0
        %1017 = vmatpush1.msra.mxu0 0.0
        %1018 = vmatprep.subr.mxu0 0.0
        %1019 = vmatpush1.msra.mxu0 0.0
        %1020 = vmatprep.mubr.f32.mxu0 0.0
        %1021 = vmatmul.mubr.f32.gmra.mrb[0].mxu0 %v939
        %v1022 = vpop.f32.mrb[0].mxu0
        %v1023 = vadd.f32 0.0, %v1022
        %v1024 = vpop.f32.mrb[0].mxu0
        %1025 = vdwg.mxu0
        %v1026 = vmul.f32 %v1023, 0.0009765625
        %v1027 = vmul.f32 %v1026, %v1026
        %v1029 = vrot.slane %v1027, 7
        %v1031 = vsub.f32 %v1026, %v1029
        %v1032 = vmax.f32 %v1031, 0.0
        %v1033 = vadd.f32 %v1032, 1e-05
        %v1034 = vrsqrt.pop %v1033
        %v1035 = vld [vmem:[%s454] sm:$0x1]
        %v1038 = vunpack.c.l.s4 1966171168
        %v1039 = vunpack.c.0.s8 %v1038
        %v1040 = vlaneseq
        %v1041 = vshrl.u32 %v1040, 7
        %v1042 = vsub.s32 %v1039, %v1041
        %v1043 = vrot.slane %v1034, %v1042
        %v1044 = vcombine.high %v1043, %v1043
        %v1046 = vunpack.c.l.s4 1966171168
        %v1047 = vunpack.c.0.s8 %v1046
        %v1048 = vlaneseq
        %v1049 = vshrl.u32 %v1048, 7
        %v1050 = vsub.s32 %v1047, %v1049
        %v1051 = vrot.slane %v1044, %v1050
        %v1053 = vmul.f32 %v1035, %v1051
        %v1054 = vld [vmem:[%s464] sm:$0x1]
        %v1055 = vmul.f32 %v1053, %v1054
        %v1056 = vld [vmem:[%s457] sm:$0x1]
        %v1057 = vmul.f32 %v1026, %v1053
        %v1058 = vsub.f32 %v1056, %v1057
        %v1059 = vmul.f32 %v1058, %v1054
        %v1060 = vld [vmem:[%s470] sm:$0x1]
        %v1061 = vadd.f32 %v1059, %v1060
        %v1063 = vlaneseq
        %v1064 = vshrl.u32 %v1063, 7
        %v1065 = vsub.s32 0, %v1064
        %v1066 = vrot.slane %v1055, %v1065
        %v1068 = vmul.f32 %v706, %v1066
        %v1069 = vmul.f32 %v709, %v1066
        %v1070 = vmul.f32 %v714, %v1066
        %v1071 = vmul.f32 %v717, %v1066
        %v1072 = vmul.f32 %v722, %v1066
        %v1073 = vmul.f32 %v725, %v1066
        %v1074 = vmul.f32 %v730, %v1066
        %v1075 = vmul.f32 %v733, %v1066
        %v1076 = vmul.f32 %v738, %v1066
        %v1077 = vmul.f32 %v741, %v1066
        %v1078 = vmul.f32 %v746, %v1066
        %v1079 = vmul.f32 %v749, %v1066
        %v1080 = vmul.f32 %v754, %v1066
        %v1081 = vmul.f32 %v757, %v1066
        %v1082 = vmul.f32 %v762, %v1066
        %v1083 = vmul.f32 %v765, %v1066
        %v1084 = vmul.f32 %v770, %v1066
        %v1085 = vmul.f32 %v773, %v1066
        %v1086 = vmul.f32 %v778, %v1066
        %v1087 = vmul.f32 %v781, %v1066
        %v1088 = vmul.f32 %v786, %v1066
        %v1089 = vmul.f32 %v789, %v1066
        %v1090 = vmul.f32 %v794, %v1066
        %v1091 = vmul.f32 %v797, %v1066
        %v1092 = vmul.f32 %v802, %v1066
        %v1093 = vmul.f32 %v805, %v1066
        %v1094 = vmul.f32 %v810, %v1066
        %v1095 = vmul.f32 %v813, %v1066
        %v1096 = vmul.f32 %v818, %v1066
        %v1097 = vmul.f32 %v821, %v1066
        %v1098 = vmul.f32 %v826, %v1066
        %v1099 = vmul.f32 %v829, %v1066
        %v1101 = vlaneseq
        %v1102 = vshrl.u32 %v1101, 7
        %v1103 = vsub.s32 0, %v1102
        %v1104 = vrot.slane %v1061, %v1103
        %v1106 = vadd.f32 %v1068, %v1104
        %v1107 = vadd.f32 %v1069, %v1104
        %v1108 = vadd.f32 %v1070, %v1104
        %v1109 = vadd.f32 %v1071, %v1104
        %v1110 = vadd.f32 %v1072, %v1104
        %v1111 = vadd.f32 %v1073, %v1104
        %v1112 = vadd.f32 %v1074, %v1104
        %v1113 = vadd.f32 %v1075, %v1104
        %v1114 = vadd.f32 %v1076, %v1104
        %v1115 = vadd.f32 %v1077, %v1104
        %v1116 = vadd.f32 %v1078, %v1104
        %v1117 = vadd.f32 %v1079, %v1104
        %v1118 = vadd.f32 %v1080, %v1104
        %v1119 = vadd.f32 %v1081, %v1104
        %v1120 = vadd.f32 %v1082, %v1104
        %v1121 = vadd.f32 %v1083, %v1104
        %v1122 = vadd.f32 %v1084, %v1104
        %v1123 = vadd.f32 %v1085, %v1104
        %v1124 = vadd.f32 %v1086, %v1104
        %v1125 = vadd.f32 %v1087, %v1104
        %v1126 = vadd.f32 %v1088, %v1104
        %v1127 = vadd.f32 %v1089, %v1104
        %v1128 = vadd.f32 %v1090, %v1104
        %v1129 = vadd.f32 %v1091, %v1104
        %v1130 = vadd.f32 %v1092, %v1104
        %v1131 = vadd.f32 %v1093, %v1104
        %v1132 = vadd.f32 %v1094, %v1104
        %v1133 = vadd.f32 %v1095, %v1104
        %v1134 = vadd.f32 %v1096, %v1104
        %v1135 = vadd.f32 %v1097, %v1104
        %v1136 = vadd.f32 %v1098, %v1104
        %v1137 = vadd.f32 %v1099, %v1104
        %v1138 = vsub.f32 0.0, %v1106
        %v1139 = vsub.f32 0.0, %v1107
        %v1140 = vsub.f32 0.0, %v1108
        %v1141 = vsub.f32 0.0, %v1109
        %v1142 = vsub.f32 0.0, %v1110
        %v1143 = vsub.f32 0.0, %v1111
        %v1144 = vsub.f32 0.0, %v1112
        %v1145 = vsub.f32 0.0, %v1113
        %v1146 = vsub.f32 0.0, %v1114
        %v1147 = vsub.f32 0.0, %v1115
        %v1148 = vsub.f32 0.0, %v1116
        %v1149 = vsub.f32 0.0, %v1117
        %v1150 = vsub.f32 0.0, %v1118
        %v1151 = vsub.f32 0.0, %v1119
        %v1152 = vsub.f32 0.0, %v1120
        %v1153 = vsub.f32 0.0, %v1121
        %v1154 = vsub.f32 0.0, %v1122
        %v1155 = vsub.f32 0.0, %v1123
        %v1156 = vsub.f32 0.0, %v1124
        %v1157 = vsub.f32 0.0, %v1125
        %v1158 = vsub.f32 0.0, %v1126
        %v1159 = vsub.f32 0.0, %v1127
        %v1160 = vsub.f32 0.0, %v1128
        %v1161 = vsub.f32 0.0, %v1129
        %v1162 = vsub.f32 0.0, %v1130
        %v1163 = vsub.f32 0.0, %v1131
        %v1164 = vsub.f32 0.0, %v1132
        %v1165 = vsub.f32 0.0, %v1133
        %v1166 = vsub.f32 0.0, %v1134
        %v1167 = vsub.f32 0.0, %v1135
        %v1168 = vsub.f32 0.0, %v1136
        %v1169 = vsub.f32 0.0, %v1137
        %v1170 = vmul.f32 %v1138, 1.442695
        %v1171 = vpow.pop %v1170
        %v1172 = vmul.f32 %v1139, 1.442695
        %v1173 = vpow.pop %v1172
        %v1174 = vmul.f32 %v1140, 1.442695
        %v1175 = vpow.pop %v1174
        %v1176 = vmul.f32 %v1141, 1.442695
        %v1177 = vpow.pop %v1176
        %v1178 = vmul.f32 %v1142, 1.442695
        %v1179 = vpow.pop %v1178
        %v1180 = vmul.f32 %v1143, 1.442695
        %v1181 = vpow.pop %v1180
        %v1182 = vmul.f32 %v1144, 1.442695
        %v1183 = vpow.pop %v1182
        %v1184 = vmul.f32 %v1145, 1.442695
        %v1185 = vpow.pop %v1184
        %v1186 = vmul.f32 %v1146, 1.442695
        %v1187 = vpow.pop %v1186
        %v1188 = vmul.f32 %v1147, 1.442695
        %v1189 = vpow.pop %v1188
        %v1190 = vmul.f32 %v1148, 1.442695
        %v1191 = vpow.pop %v1190
        %v1192 = vmul.f32 %v1149, 1.442695
        %v1193 = vpow.pop %v1192
        %v1194 = vmul.f32 %v1150, 1.442695
        %v1195 = vpow.pop %v1194
        %v1196 = vmul.f32 %v1151, 1.442695
        %v1197 = vpow.pop %v1196
        %v1198 = vmul.f32 %v1152, 1.442695
        %v1199 = vpow.pop %v1198
        %v1200 = vmul.f32 %v1153, 1.442695
        %v1201 = vpow.pop %v1200
        %v1202 = vmul.f32 %v1154, 1.442695
        %v1203 = vpow.pop %v1202
        %v1204 = vmul.f32 %v1155, 1.442695
        %v1205 = vpow.pop %v1204
        %v1206 = vmul.f32 %v1156, 1.442695
        %v1207 = vpow.pop %v1206
        %v1208 = vmul.f32 %v1157, 1.442695
        %v1209 = vpow.pop %v1208
        %v1210 = vmul.f32 %v1158, 1.442695
        %v1211 = vpow.pop %v1210
        %v1212 = vmul.f32 %v1159, 1.442695
        %v1213 = vpow.pop %v1212
        %v1214 = vmul.f32 %v1160, 1.442695
        %v1215 = vpow.pop %v1214
        %v1216 = vmul.f32 %v1161, 1.442695
        %v1217 = vpow.pop %v1216
        %v1218 = vmul.f32 %v1162, 1.442695
        %v1219 = vpow.pop %v1218
        %v1220 = vmul.f32 %v1163, 1.442695
        %v1221 = vpow.pop %v1220
        %v1222 = vmul.f32 %v1164, 1.442695
        %v1223 = vpow.pop %v1222
        %v1224 = vmul.f32 %v1165, 1.442695
        %v1225 = vpow.pop %v1224
        %v1226 = vmul.f32 %v1166, 1.442695
        %v1227 = vpow.pop %v1226
        %v1228 = vmul.f32 %v1167, 1.442695
        %v1229 = vpow.pop %v1228
        %v1230 = vmul.f32 %v1168, 1.442695
        %v1231 = vpow.pop %v1230
        %v1232 = vmul.f32 %v1169, 1.442695
        %v1233 = vpow.pop %v1232
        %v1234 = vadd.f32 %v1171, 1.0
        %v1235 = vadd.f32 %v1173, 1.0
        %v1236 = vadd.f32 %v1175, 1.0
        %v1237 = vadd.f32 %v1177, 1.0
        %v1238 = vadd.f32 %v1179, 1.0
        %v1239 = vadd.f32 %v1181, 1.0
        %v1240 = vadd.f32 %v1183, 1.0
        %v1241 = vadd.f32 %v1185, 1.0
        %v1242 = vadd.f32 %v1187, 1.0
        %v1243 = vadd.f32 %v1189, 1.0
        %v1244 = vadd.f32 %v1191, 1.0
        %v1245 = vadd.f32 %v1193, 1.0
        %v1246 = vadd.f32 %v1195, 1.0
        %v1247 = vadd.f32 %v1197, 1.0
        %v1248 = vadd.f32 %v1199, 1.0
        %v1249 = vadd.f32 %v1201, 1.0
        %v1250 = vadd.f32 %v1203, 1.0
        %v1251 = vadd.f32 %v1205, 1.0
        %v1252 = vadd.f32 %v1207, 1.0
        %v1253 = vadd.f32 %v1209, 1.0
        %v1254 = vadd.f32 %v1211, 1.0
        %v1255 = vadd.f32 %v1213, 1.0
        %v1256 = vadd.f32 %v1215, 1.0
        %v1257 = vadd.f32 %v1217, 1.0
        %v1258 = vadd.f32 %v1219, 1.0
        %v1259 = vadd.f32 %v1221, 1.0
        %v1260 = vadd.f32 %v1223, 1.0
        %v1261 = vadd.f32 %v1225, 1.0
        %v1262 = vadd.f32 %v1227, 1.0
        %v1263 = vadd.f32 %v1229, 1.0
        %v1264 = vadd.f32 %v1231, 1.0
        %v1265 = vadd.f32 %v1233, 1.0
        %v1266 = vrcp.pop %v1234
        %v1267 = vrcp.pop %v1235
        %v1268 = vrcp.pop %v1236
        %v1269 = vrcp.pop %v1237
        %v1270 = vrcp.pop %v1238
        %v1271 = vrcp.pop %v1239
        %v1272 = vrcp.pop %v1240
        %v1273 = vrcp.pop %v1241
        %v1274 = vrcp.pop %v1242
        %v1275 = vrcp.pop %v1243
        %v1276 = vrcp.pop %v1244
        %v1277 = vrcp.pop %v1245
        %v1278 = vrcp.pop %v1246
        %v1279 = vrcp.pop %v1247
        %v1280 = vrcp.pop %v1248
        %v1281 = vrcp.pop %v1249
        %v1282 = vrcp.pop %v1250
        %v1283 = vrcp.pop %v1251
        %v1284 = vrcp.pop %v1252
        %v1285 = vrcp.pop %v1253
        %v1286 = vrcp.pop %v1254
        %v1287 = vrcp.pop %v1255
        %v1288 = vrcp.pop %v1256
        %v1289 = vrcp.pop %v1257
        %v1290 = vrcp.pop %v1258
        %v1291 = vrcp.pop %v1259
        %v1292 = vrcp.pop %v1260
        %v1293 = vrcp.pop %v1261
        %v1294 = vrcp.pop %v1262
        %v1295 = vrcp.pop %v1263
        %v1296 = vrcp.pop %v1264
        %v1297 = vrcp.pop %v1265
        %v1298 = vmul.f32 %v1106, %v1266
        %v1299 = vmul.f32 %v1107, %v1267
        %v1300 = vmul.f32 %v1108, %v1268
        %v1301 = vmul.f32 %v1109, %v1269
        %v1302 = vmul.f32 %v1110, %v1270
        %v1303 = vmul.f32 %v1111, %v1271
        %v1304 = vmul.f32 %v1112, %v1272
        %v1305 = vmul.f32 %v1113, %v1273
        %v1306 = vmul.f32 %v1114, %v1274
        %v1307 = vmul.f32 %v1115, %v1275
        %v1308 = vmul.f32 %v1116, %v1276
        %v1309 = vmul.f32 %v1117, %v1277
        %v1310 = vmul.f32 %v1118, %v1278
        %v1311 = vmul.f32 %v1119, %v1279
        %v1312 = vmul.f32 %v1120, %v1280
        %v1313 = vmul.f32 %v1121, %v1281
        %v1314 = vmul.f32 %v1122, %v1282
        %v1315 = vmul.f32 %v1123, %v1283
        %v1316 = vmul.f32 %v1124, %v1284
        %v1317 = vmul.f32 %v1125, %v1285
        %v1318 = vmul.f32 %v1126, %v1286
        %v1319 = vmul.f32 %v1127, %v1287
        %v1320 = vmul.f32 %v1128, %v1288
        %v1321 = vmul.f32 %v1129, %v1289
        %v1322 = vmul.f32 %v1130, %v1290
        %v1323 = vmul.f32 %v1131, %v1291
        %v1324 = vmul.f32 %v1132, %v1292
        %v1325 = vmul.f32 %v1133, %v1293
        %v1326 = vmul.f32 %v1134, %v1294
        %v1327 = vmul.f32 %v1135, %v1295
        %v1328 = vmul.f32 %v1136, %v1296
        %v1329 = vmul.f32 %v1137, %v1297
        %1330 = vst [vmem:[%s448] sm:$0xff] %v1298
        %1331 = vst [vmem:[%s448 + $0x8] sm:$0xff] %v1299
        %1332 = vst [vmem:[%s448 + $0x10] sm:$0xff] %v1300
        %1333 = vst [vmem:[%s448 + $0x18] sm:$0xff] %v1301
        %1334 = vst [vmem:[%s448 + $0x20] sm:$0xff] %v1302
        %1335 = vst [vmem:[%s448 + $0x28] sm:$0xff] %v1303
        %1336 = vst [vmem:[%s448 + $0x30] sm:$0xff] %v1304
        %1337 = vst [vmem:[%s448 + $0x38] sm:$0xff] %v1305
        %1338 = vst [vmem:[%s448 + $0x40] sm:$0xff] %v1306
        %1339 = vst [vmem:[%s448 + $0x48] sm:$0xff] %v1307
        %1340 = vst [vmem:[%s448 + $0x50] sm:$0xff] %v1308
        %1341 = vst [vmem:[%s448 + $0x58] sm:$0xff] %v1309
        %1342 = vst [vmem:[%s448 + $0x60] sm:$0xff] %v1310
        %1343 = vst [vmem:[%s448 + $0x68] sm:$0xff] %v1311
        %1344 = vst [vmem:[%s448 + $0x70] sm:$0xff] %v1312
        %1345 = vst [vmem:[%s448 + $0x78] sm:$0xff] %v1313
        %1346 = vst [vmem:[%s448 + $0x80] sm:$0xff] %v1314
        %1347 = vst [vmem:[%s448 + $0x88] sm:$0xff] %v1315
        %1348 = vst [vmem:[%s448 + $0x90] sm:$0xff] %v1316
        %1349 = vst [vmem:[%s448 + $0x98] sm:$0xff] %v1317
        %1350 = vst [vmem:[%s448 + $0xa0] sm:$0xff] %v1318
        %1351 = vst [vmem:[%s448 + $0xa8] sm:$0xff] %v1319
        %1352 = vst [vmem:[%s448 + $0xb0] sm:$0xff] %v1320
        %1353 = vst [vmem:[%s448 + $0xb8] sm:$0xff] %v1321
        %1354 = vst [vmem:[%s448 + $0xc0] sm:$0xff] %v1322
        %1355 = vst [vmem:[%s448 + $0xc8] sm:$0xff] %v1323
        %1356 = vst [vmem:[%s448 + $0xd0] sm:$0xff] %v1324
        %1357 = vst [vmem:[%s448 + $0xd8] sm:$0xff] %v1325
        %1358 = vst [vmem:[%s448 + $0xe0] sm:$0xff] %v1326
        %1359 = vst [vmem:[%s448 + $0xe8] sm:$0xff] %v1327
        %1360 = vst [vmem:[%s448 + $0xf0] sm:$0xff] %v1328
        %1361 = vst [vmem:[%s448 + $0xf8] sm:$0xff] %v1329
        %s1362 = sand.u32 %s257, 1
        %s1363 = scalar_lea.sflag [#allocation4], %s1362
        %s1364 = sand.u32 %s257, 1
        %s1365 = smul.addr %s1364, 256
        %s1366 = scalar_lea.vmem [#allocation8], %s1365
        // Predicated region
        $region65: #{tpu_custom_call.1} parent=51 // pred_check
          %p1367 = pneg %p267
        $region66: #{tpu_custom_call.1} parent=51 // pred_check_branch
          %1369 = sbr.rel (%p1367) target = $region68
        $region67: #{tpu_custom_call.1} parent=51 // pred_region
          %s1371 = ssub.s32 4096, 4096
          %1372 = vsyncadd %s1363, %s1371
          %s1373 = smul.addr %s30, 32
          %s1374 = sadd.s32 %s31, %s1373
          %s1375 = smul.addr %s1374, 128
          %s1376 = scalar_lea.hbm %s8, %s1375
          %s1377 = sshll.u32 %s1366, 4
          %s1378 = int_to_ptr.vmem [resolvable:$true] %s1377
          %1383 = dma.vmem_to_hbm [thread:$0]  %s1378, 4096, %s1376, %s1363, 128, 128, 8
        $region68: #{tpu_custom_call.1} parent=51 // pred_fallthru
          _
      $region52: #{tpu_custom_call.1} parent=5 // pred_fallthru
        _
      %p1384 = scmp.le.s32.totalorder 2, %s21
      // Predicated region
      $region69: #{tpu_custom_call.1} parent=5 // pred_check
        %p1385 = pneg %p1384
      $region70: #{tpu_custom_call.1} parent=5 // pred_check_branch
        %1387 = sbr.rel (%p1385) target = $region72
      $region71: #{tpu_custom_call.1} parent=5 // pred_region
        %s1388 = ssub.s32 %s21, 2
        // Predicated region
        $region73: #{tpu_custom_call.1} parent=71 // pred_check
          %p1389 = pneg %p273
        $region74: #{tpu_custom_call.1} parent=71 // pred_check_branch
          %1391 = sbr.rel (%p1389) target = $region76
        $region75: #{tpu_custom_call.1} parent=71 // pred_region
          %s1392 = sand.u32 %s258, 1
          %s1393 = scalar_lea.sflag [#allocation4], %s1392
          %s1394 = sand.u32 %s258, 1
          %s1395 = smul.addr %s1394, 256
          %s1396 = scalar_lea.vmem [#allocation8], %s1395
          %1397 = dma.done %s1393, 4096
        $region76: #{tpu_custom_call.1} parent=71 // pred_fallthru
          _
      $region72: #{tpu_custom_call.1} parent=5 // pred_fallthru
        _
    $region6: #{tpu_custom_call.1} parent=1 // loop_footer
      %s25 = sadd.s32 1, %s21
    $region7: #{tpu_custom_call.1} parent=1 // loop_footer_branch
      %20 = sbr.rel target = $region3
    $region8: #{tpu_custom_call.1} parent=1 // loop_exit
      _
    %1398 = vsyncpa [#allocation3], 1
    %s1399 = scalar_lea.sflag [#allocation3], 1
    %1400 = vsyncpa %s1399, 1
    %1401 = vsyncpa [#allocation6], 1
    %1402 = vsyncpa [#allocation4], 1
    %s1403 = scalar_lea.sflag [#allocation4], 1
    %1404 = vsyncpa %s1403, 1

</llo_original>
